<compile_context>
chip_gen: v6e
topology: v6e:2x2x1
jax: 0.10.0
libtpu: 0.0.40
codegen_flags: <defaults>
</compile_context>

<pallas_src>
import jax
import jax.numpy as jnp
from jax.experimental import pallas as pl
from jax.experimental.pallas import tpu as pltpu

NEG_BIG = -1e30  # bias for padded class columns -> exp() underflows to 0 in the lse


def dnn4l_kernel(x_ref,
                 w1_ref, b1_ref,
                 w2_ref, b2_ref,
                 w3_ref, b3_ref,
                 w4_ref, b4_ref,
                 o_ref):
    # x: (TB, F) f32 in HBM -> cast to bf16 in-kernel (no wrapper cast pass).
    # weights bf16 (BN + linear bias pre-folded); biases f32 (1, Fout).
    x = x_ref[...].astype(jnp.bfloat16)

    h = jnp.dot(x, w1_ref[...], preferred_element_type=jnp.float32) + b1_ref[...]
    h = jnp.maximum(h, 0.0).astype(jnp.bfloat16)          # Dropout == identity (eval)

    h = jnp.dot(h, w2_ref[...], preferred_element_type=jnp.float32) + b2_ref[...]
    h = jnp.maximum(h, 0.0).astype(jnp.bfloat16)

    h = jnp.dot(h, w3_ref[...], preferred_element_type=jnp.float32) + b3_ref[...]
    h = jnp.maximum(h, 0.0).astype(jnp.bfloat16)          # h3 padded to 128 lanes (zeros)

    # Final layer + log_softmax in f32. Padded class columns: weight 0 / bias -1e30
    # (f32!), so exp() underflows to 0 in the lse; padded hidden columns are exactly 0.
    logits = jnp.dot(h, w4_ref[...], preferred_element_type=jnp.float32) + b4_ref[...]
    m = jnp.max(logits, axis=-1, keepdims=True)
    z = logits - m
    lse = jnp.log(jnp.sum(jnp.exp(z), axis=-1, keepdims=True))
    o_ref[...] = (z - lse).astype(o_ref.dtype)


def _round_up(v, m):
    return ((v + m - 1) // m) * m


def _choose_tb(B, block_b):
    """Batch tile: multiple of 16 (bf16 packing), 256-aligned when large, capped at
    4096 (v7x VMEM); for small B, aim for 2 balanced grid steps (2 TCs on v7x)."""
    cap = max(16, min(int(block_b), 4096))
    cap = (cap // 256) * 256 if cap >= 256 else (cap // 16) * 16
    if B > cap:
        return cap
    if B > 32:
        return _round_up((B + 1) // 2, 16)     # two balanced steps
    return _round_up(max(B, 1), 16)            # tiny batch: one step


def dnn4l_forward(x, params, *, block_b=1024, eps=1e-5, out_dtype=jnp.float32):
    """Eval-mode forward of DNN_4l. x: (B, input_dim) f32. Returns (B, num_classes)."""

    def fold(w, b, gamma, beta, mean, var):
        # Fold BN (running stats) and the linear bias into the weight / a single bias.
        scale = gamma / jnp.sqrt(var + eps)
        shift = beta - mean * scale
        return w * scale[None, :], b * scale + shift

    w1, b1 = fold(params["w1"], params["b1"], params["g1"], params["be1"], params["m1"], params["v1"])
    w2, b2 = fold(params["w2"], params["b2"], params["g2"], params["be2"], params["m2"], params["v2"])
    w3, b3 = fold(params["w3"], params["b3"], params["g3"], params["be3"], params["m3"], params["v3"])
    w4, b4 = params["w4"], params["b4"]

    B, F = x.shape
    H3 = w3.shape[1]
    C = w4.shape[1]
    assert C <= 128, "class dim padded to a single 128-lane slab"

    # --- lane-dense padding ---------------------------------------------------
    # h3: 64 -> 128 (zero weight cols, zero bias -> ReLU keeps padded cols at 0).
    H3P = _round_up(H3, 128)
    w3p = jnp.pad(w3, ((0, 0), (0, H3P - H3)))
    b3p = jnp.pad(b3, (0, H3P - H3))
    w4p = jnp.pad(w4, ((0, H3P - H3), (0, 0)))
    # classes: C -> 128 (zero weight cols, -1e30 bias; bias stays f32 on purpose).
    C_PAD = _round_up(C, 128)
    w4p = jnp.pad(w4p, ((0, 0), (0, C_PAD - C)))
    b4p = jnp.pad(b4, (0, C_PAD - C), constant_values=NEG_BIG)

    # --- batch tiling (weights stay VMEM-resident across steps) ----------------
    TB = _choose_tb(B, block_b)
    Bp = _round_up(B, TB)
    if Bp != B:
        x = jnp.pad(x, ((0, Bp - B), (0, 0)))   # only when TB does not divide B

    # bf16 MXU weights; biases kept f32 (required for the -1e30 padded-class trick).
    w1b, w2b, w3b, w4b = (w.astype(jnp.bfloat16) for w in (w1, w2, w3p, w4p))
    b1f, b2f, b3f, b4f = (b[None, :].astype(jnp.float32) for b in (b1, b2, b3p, b4p))
    assert b4f.dtype == jnp.float32
    weight_args = (w1b, b1f, w2b, b2f, w3b, b3f, w4b, b4f)

    def const_spec(shape):
        # Constant block index -> fetched once, resident in VMEM for all grid steps.
        return pl.BlockSpec(shape, lambda i: (0,) * len(shape))

    in_specs = [pl.BlockSpec((TB, F), lambda i: (i, 0))] + [const_spec(a.shape) for a in weight_args]
    out_specs = pl.BlockSpec((TB, C_PAD), lambda i: (i, 0))

    H1, H2 = w1.shape[1], w2.shape[1]
    flops = 2 * Bp * (F * H1 + H1 * H2 + H2 * H3P + H3P * C_PAD)
    out_bytes = jnp.dtype(out_dtype).itemsize
    bytes_accessed = (Bp * F * 4                                   # x read as f32
                      + sum(int(w.size) * 2 for w in (w1b, w2b, w3b, w4b))
                      + sum(int(b.size) * 4 for b in (b1f, b2f, b3f, b4f))
                      + Bp * C_PAD * out_bytes)
    cost = pl.CostEstimate(flops=int(flops),
                           transcendentals=int(Bp * C_PAD),
                           bytes_accessed=int(bytes_accessed))

    out = pl.pallas_call(
        dnn4l_kernel,
        out_shape=jax.ShapeDtypeStruct((Bp, C_PAD), out_dtype),
        grid_spec=pltpu.PrefetchScalarGridSpec(
            num_scalar_prefetch=0,
            grid=(Bp // TB,),
            in_specs=in_specs,
            out_specs=out_specs,
        ),
        compiler_params=pltpu.CompilerParams(dimension_semantics=("parallel",)),
        cost_estimate=cost,
    )(x, *weight_args)

    return out[:B, :C]


def make_params(key, input_dim=256, num_classes=7):
    dims = [input_dim, 512, 256, 64, num_classes]
    params = {}
    keys = jax.random.split(key, 20)
    k = 0
    for li in range(4):
        fan_in, fan_out = dims[li], dims[li + 1]
        bound = 1.0 / jnp.sqrt(fan_in)
        params[f"w{li+1}"] = jax.random.uniform(
            keys[k], (fan_in, fan_out), jnp.float32, -bound, bound); k += 1
        params[f"b{li+1}"] = jax.random.uniform(
            keys[k], (fan_out,), jnp.float32, -bound, bound); k += 1
    # BatchNorm1d params (non-trivial running stats for a real test)
    for bi, f in zip(range(1, 4), dims[1:4]):
        params[f"g{bi}"] = 1.0 + 0.1 * jax.random.normal(keys[k], (f,), jnp.float32); k += 1
        params[f"be{bi}"] = 0.1 * jax.random.normal(keys[k], (f,), jnp.float32); k += 1
        params[f"m{bi}"] = 0.05 * jax.random.normal(keys[k], (f,), jnp.float32); k += 1
        params[f"v{bi}"] = 1.0 + 0.1 * jax.random.uniform(keys[k], (f,), jnp.float32); k += 1
    return params


def reference_forward(x, params):
    eps = 1e-5
    h = x @ params["w1"] + params["b1"]
    h = (h - params["m1"]) / jnp.sqrt(params["v1"] + eps) * params["g1"] + params["be1"]
    h = jnp.maximum(h, 0.0)
    h = h @ params["w2"] + params["b2"]
    h = (h - params["m2"]) / jnp.sqrt(params["v2"] + eps) * params["g2"] + params["be2"]
    h = jnp.maximum(h, 0.0)
    h = h @ params["w3"] + params["b3"]
    h = (h - params["m3"]) / jnp.sqrt(params["v3"] + eps) * params["g3"] + params["be3"]
    h = jnp.maximum(h, 0.0)
    logits = h @ params["w4"] + params["b4"]
    return jax.nn.log_softmax(logits, axis=1)


if __name__ == "__main__":
    key = jax.random.PRNGKey(0)
    kx, kp = jax.random.split(key)
    B, INPUT_DIM, NUM_CLASSES = 64, 256, 7

    x = jax.random.normal(kx, (B, INPUT_DIM), jnp.float32)
    params = make_params(kp, INPUT_DIM, NUM_CLASSES)

    # Default block_b; at B=64 the tile chooser gives TB=32 -> a 2-step grid (exercises
    # weight residency across steps and the v7x two-TC split), with no batch padding.
    out = dnn4l_forward(x, params)
    out = jax.block_until_ready(out)

    ref = reference_forward(x, params)
    assert out.shape == (B, NUM_CLASSES)
    assert jnp.all(jnp.isfinite(out)), "non-finite output"
    # bf16 weights/activations (f32 accumulation) -> loosened tolerance vs the f32 reference.
    assert jnp.allclose(out, ref, atol=5e-2, rtol=5e-2), "mismatch vs JAX reference"

    print("KERNEL_OK")
</pallas_src>

<mosaic_0001>
module attributes {stable_mosaic.version = 11 : i64} {
  func.func @dnn4l_kernel(%arg0: i32, %arg1: memref<32x256xf32, #tpu.memory_space<vmem>>, %arg2: memref<256x512xbf16, #tpu.memory_space<vmem>>, %arg3: memref<1x512xf32, #tpu.memory_space<vmem>>, %arg4: memref<512x256xbf16, #tpu.memory_space<vmem>>, %arg5: memref<1x256xf32, #tpu.memory_space<vmem>>, %arg6: memref<256x128xbf16, #tpu.memory_space<vmem>>, %arg7: memref<1x128xf32, #tpu.memory_space<vmem>>, %arg8: memref<128x128xbf16, #tpu.memory_space<vmem>>, %arg9: memref<1x128xf32, #tpu.memory_space<vmem>>, %arg10: memref<32x128xf32, #tpu.memory_space<vmem>>) attributes {dimension_semantics = [#tpu.dimension_semantics<parallel>], iteration_bounds = array<i64: 2>, scalar_prefetch = 0 : i64, scratch_operands = 0 : i64, tpu.core_type = #tpu.core_type<tc>, window_params = [{transform_indices = @transform_0, window_bounds = array<i64: 32, 256>}, {pipeline_mode = #tpu.pipeline_mode<synchronous>, transform_indices = @transform_1, window_bounds = array<i64: 256, 512>}, {pipeline_mode = #tpu.pipeline_mode<synchronous>, transform_indices = @transform_2, window_bounds = array<i64: 1, 512>}, {pipeline_mode = #tpu.pipeline_mode<synchronous>, transform_indices = @transform_3, window_bounds = array<i64: 512, 256>}, {pipeline_mode = #tpu.pipeline_mode<synchronous>, transform_indices = @transform_4, window_bounds = array<i64: 1, 256>}, {pipeline_mode = #tpu.pipeline_mode<synchronous>, transform_indices = @transform_5, window_bounds = array<i64: 256, 128>}, {pipeline_mode = #tpu.pipeline_mode<synchronous>, transform_indices = @transform_6, window_bounds = array<i64: 1, 128>}, {pipeline_mode = #tpu.pipeline_mode<synchronous>, transform_indices = @transform_7, window_bounds = array<i64: 128, 128>}, {pipeline_mode = #tpu.pipeline_mode<synchronous>, transform_indices = @transform_8, window_bounds = array<i64: 1, 128>}, {transform_indices = @transform_9, window_bounds = array<i64: 32, 128>}]} {
    %c0 = arith.constant 0 : index
    %c0_0 = arith.constant 0 : index
    %0 = vector.load %arg1[%c0, %c0_0] : memref<32x256xf32, #tpu.memory_space<vmem>>, vector<32x256xf32>
    %1 = arith.truncf %0 : vector<32x256xf32> to vector<32x256xbf16>
    %c0_1 = arith.constant 0 : index
    %c0_2 = arith.constant 0 : index
    %2 = vector.load %arg2[%c0_1, %c0_2] : memref<256x512xbf16, #tpu.memory_space<vmem>>, vector<256x512xbf16>
    %cst = arith.constant dense<0.000000e+00> : vector<32x512xf32>
    %3 = tpu.matmul %1, %2, %cst {dimension_numbers = #tpu.dot_dimension_numbers<[1], [0], [0], [1], [0, 0, 1, 1], [], []>} : vector<32x256xbf16>, vector<256x512xbf16>, vector<32x512xf32> -> vector<32x512xf32>
    %c0_3 = arith.constant 0 : index
    %c0_4 = arith.constant 0 : index
    %4 = vector.load %arg3[%c0_3, %c0_4] : memref<1x512xf32, #tpu.memory_space<vmem>>, vector<1x512xf32>
    %5 = vector.broadcast %4 : vector<1x512xf32> to vector<32x512xf32>
    %6 = arith.addf %3, %5 : vector<32x512xf32>
    %cst_5 = arith.constant 0.000000e+00 : f32
    %7 = vector.broadcast %cst_5 : f32 to vector<32x512xf32>
    %8 = arith.maximumf %6, %7 : vector<32x512xf32>
    %9 = arith.truncf %8 : vector<32x512xf32> to vector<32x512xbf16>
    %c0_6 = arith.constant 0 : index
    %c0_7 = arith.constant 0 : index
    %10 = vector.load %arg4[%c0_6, %c0_7] : memref<512x256xbf16, #tpu.memory_space<vmem>>, vector<512x256xbf16>
    %cst_8 = arith.constant dense<0.000000e+00> : vector<32x256xf32>
    %11 = tpu.matmul %9, %10, %cst_8 {dimension_numbers = #tpu.dot_dimension_numbers<[1], [0], [0], [1], [0, 0, 1, 1], [], []>} : vector<32x512xbf16>, vector<512x256xbf16>, vector<32x256xf32> -> vector<32x256xf32>
    %c0_9 = arith.constant 0 : index
    %c0_10 = arith.constant 0 : index
    %12 = vector.load %arg5[%c0_9, %c0_10] : memref<1x256xf32, #tpu.memory_space<vmem>>, vector<1x256xf32>
    %13 = vector.broadcast %12 : vector<1x256xf32> to vector<32x256xf32>
    %14 = arith.addf %11, %13 : vector<32x256xf32>
    %cst_11 = arith.constant 0.000000e+00 : f32
    %15 = vector.broadcast %cst_11 : f32 to vector<32x256xf32>
    %16 = arith.maximumf %14, %15 : vector<32x256xf32>
    %17 = arith.truncf %16 : vector<32x256xf32> to vector<32x256xbf16>
    %c0_12 = arith.constant 0 : index
    %c0_13 = arith.constant 0 : index
    %18 = vector.load %arg6[%c0_12, %c0_13] : memref<256x128xbf16, #tpu.memory_space<vmem>>, vector<256x128xbf16>
    %cst_14 = arith.constant dense<0.000000e+00> : vector<32x128xf32>
    %19 = tpu.matmul %17, %18, %cst_14 {dimension_numbers = #tpu.dot_dimension_numbers<[1], [0], [0], [1], [0, 0, 1, 1], [], []>} : vector<32x256xbf16>, vector<256x128xbf16>, vector<32x128xf32> -> vector<32x128xf32>
    %c0_15 = arith.constant 0 : index
    %c0_16 = arith.constant 0 : index
    %20 = vector.load %arg7[%c0_15, %c0_16] : memref<1x128xf32, #tpu.memory_space<vmem>>, vector<1x128xf32>
    %21 = vector.broadcast %20 : vector<1x128xf32> to vector<32x128xf32>
    %22 = arith.addf %19, %21 : vector<32x128xf32>
    %cst_17 = arith.constant 0.000000e+00 : f32
    %23 = vector.broadcast %cst_17 : f32 to vector<32x128xf32>
    %24 = arith.maximumf %22, %23 : vector<32x128xf32>
    %25 = arith.truncf %24 : vector<32x128xf32> to vector<32x128xbf16>
    %c0_18 = arith.constant 0 : index
    %c0_19 = arith.constant 0 : index
    %26 = vector.load %arg8[%c0_18, %c0_19] : memref<128x128xbf16, #tpu.memory_space<vmem>>, vector<128x128xbf16>
    %cst_20 = arith.constant dense<0.000000e+00> : vector<32x128xf32>
    %27 = tpu.matmul %25, %26, %cst_20 {dimension_numbers = #tpu.dot_dimension_numbers<[1], [0], [0], [1], [0, 0, 1, 1], [], []>} : vector<32x128xbf16>, vector<128x128xbf16>, vector<32x128xf32> -> vector<32x128xf32>
    %c0_21 = arith.constant 0 : index
    %c0_22 = arith.constant 0 : index
    %28 = vector.load %arg9[%c0_21, %c0_22] : memref<1x128xf32, #tpu.memory_space<vmem>>, vector<1x128xf32>
    %29 = vector.broadcast %28 : vector<1x128xf32> to vector<32x128xf32>
    %30 = arith.addf %27, %29 : vector<32x128xf32>
    %cst_23 = arith.constant dense<0xFF800000> : vector<32xf32>
    %31 = vector.multi_reduction <maximumf>, %30, %cst_23 [1] : vector<32x128xf32> to vector<32xf32>
    %32 = vector.shape_cast %31 : vector<32xf32> to vector<32x1xf32>
    %33 = vector.broadcast %32 : vector<32x1xf32> to vector<32x128xf32>
    %34 = arith.subf %30, %33 : vector<32x128xf32>
    %35 = math.exp %34 : vector<32x128xf32>
    %cst_24 = arith.constant dense<0.000000e+00> : vector<32xf32>
    %36 = vector.multi_reduction <add>, %35, %cst_24 [1] : vector<32x128xf32> to vector<32xf32>
    %37 = vector.shape_cast %36 : vector<32xf32> to vector<32x1xf32>
    %38 = math.log %37 : vector<32x1xf32>
    %39 = vector.broadcast %38 : vector<32x1xf32> to vector<32x128xf32>
    %40 = arith.subf %34, %39 : vector<32x128xf32>
    %c0_25 = arith.constant 0 : index
    %c0_26 = arith.constant 0 : index
    %41 = vector.load %arg10[%c0_25, %c0_26] : memref<32x128xf32, #tpu.memory_space<vmem>>, vector<32x128xf32>
    tpu.vector_store %arg10[%c0_25, %c0_26], %40 {strides = array<i32>} : memref<32x128xf32, #tpu.memory_space<vmem>>, vector<32x128xf32>,
    return
  }
  func.func @transform_0(%arg0: i32) -> (i32, i32) {
    %c0_i32 = arith.constant 0 : i32
    %c0_i32_0 = arith.constant 0 : i32
    return %arg0, %c0_i32 : i32, i32
  }
  func.func @transform_1(%arg0: i32) -> (i32, i32) {
    %c0_i32 = arith.constant 0 : i32
    %c0_i32_0 = arith.constant 0 : i32
    %c0_i32_1 = arith.constant 0 : i32
    return %c0_i32, %c0_i32_0 : i32, i32
  }
  func.func @transform_2(%arg0: i32) -> (i32, i32) {
    %c0_i32 = arith.constant 0 : i32
    %c0_i32_0 = arith.constant 0 : i32
    %c0_i32_1 = arith.constant 0 : i32
    return %c0_i32, %c0_i32_0 : i32, i32
  }
  func.func @transform_3(%arg0: i32) -> (i32, i32) {
    %c0_i32 = arith.constant 0 : i32
    %c0_i32_0 = arith.constant 0 : i32
    %c0_i32_1 = arith.constant 0 : i32
    return %c0_i32, %c0_i32_0 : i32, i32
  }
  func.func @transform_4(%arg0: i32) -> (i32, i32) {
    %c0_i32 = arith.constant 0 : i32
    %c0_i32_0 = arith.constant 0 : i32
    %c0_i32_1 = arith.constant 0 : i32
    return %c0_i32, %c0_i32_0 : i32, i32
  }
  func.func @transform_5(%arg0: i32) -> (i32, i32) {
    %c0_i32 = arith.constant 0 : i32
    %c0_i32_0 = arith.constant 0 : i32
    %c0_i32_1 = arith.constant 0 : i32
    return %c0_i32, %c0_i32_0 : i32, i32
  }
  func.func @transform_6(%arg0: i32) -> (i32, i32) {
    %c0_i32 = arith.constant 0 : i32
    %c0_i32_0 = arith.constant 0 : i32
    %c0_i32_1 = arith.constant 0 : i32
    return %c0_i32, %c0_i32_0 : i32, i32
  }
  func.func @transform_7(%arg0: i32) -> (i32, i32) {
    %c0_i32 = arith.constant 0 : i32
    %c0_i32_0 = arith.constant 0 : i32
    %c0_i32_1 = arith.constant 0 : i32
    return %c0_i32, %c0_i32_0 : i32, i32
  }
  func.func @transform_8(%arg0: i32) -> (i32, i32) {
    %c0_i32 = arith.constant 0 : i32
    %c0_i32_0 = arith.constant 0 : i32
    %c0_i32_1 = arith.constant 0 : i32
    return %c0_i32, %c0_i32_0 : i32, i32
  }
  func.func @transform_9(%arg0: i32) -> (i32, i32) {
    %c0_i32 = arith.constant 0 : i32
    %c0_i32_0 = arith.constant 0 : i32
    return %arg0, %c0_i32 : i32, i32
  }
}

</mosaic_0001>

<llo_original>
// kernel: tpu_custom_call.1
$region0: #{tpu_custom_call.1}
  #allocation0 [shape = 'u32[]', space=smem, size = 0x4, offset = 0x4, fixed_abs, tag = 'smem constant byte address 0x4 - core index']
  #allocation1 [shape = 'u32[144,128]{1,0:T(1,128)}', space=vmem, size = 0x12000, scoped, tag = 'internal scratch']
  %s0 = inlined_call_operand.hbm [shape: f32[64,256], index: 0, kind: input, shape index: {}]
  %s1 = inlined_call_operand.hbm [shape: bf16[256,512], index: 1, kind: input, shape index: {}]
  %s2 = inlined_call_operand.hbm [shape: f32[1,512], index: 2, kind: input, shape index: {}]
  %s3 = inlined_call_operand.hbm [shape: bf16[512,256], index: 3, kind: input, shape index: {}]
  %s4 = inlined_call_operand.vmem [shape: f32[1,256], index: 4, kind: input, shape index: {}]
  %s5 = inlined_call_operand.hbm [shape: bf16[256,128], index: 5, kind: input, shape index: {}]
  %s6 = inlined_call_operand.vmem [shape: f32[1,128], index: 6, kind: input, shape index: {}]
  %s7 = inlined_call_operand.hbm [shape: bf16[128,128], index: 7, kind: input, shape index: {}]
  %s8 = inlined_call_operand.vmem [shape: f32[1,128], index: 8, kind: input, shape index: {}]
  %s9 = inlined_call_operand.hbm [shape: f32[64,128], index: 9, kind: output, shape index: {}]
  %s10 = sld [smem:[#allocation0]]
  $region93: #{tpu_custom_call.1} parent=0
    _
  %s12 = ssub.s32 1, %s10
  %s13 = scalar_select 0, %s12, %s10
  $region1: #{tpu_custom_call.1} parent=0
    #allocation2 [shape = 'u8[65536]{0}', space=vmem, size = 0x10000, scoped, tag = 'input window, operand 0']
    #allocation3 [shape = 's32[2]{0}', space=sflag, size = 0x8, scoped, tag = 'scoped memory for tpu_custom_call.1']
    #allocation4 [shape = 's32[2]{0}', space=sflag, size = 0x8, scoped, tag = 'scoped memory for tpu_custom_call.1']
    #allocation5 [shape = 'u8[262144]{0}', space=vmem, size = 0x40000, scoped, tag = 'input window, operand 1, single buffered']
    #allocation6 [shape = 's32[1]{0}', space=sflag, size = 0x4, scoped, tag = 'scoped memory for tpu_custom_call.1']
    #allocation7 [shape = 'u8[2048]{0}', space=vmem, size = 0x800, scoped, tag = 'input window, operand 2, single buffered']
    #allocation8 [shape = 'u8[262144]{0}', space=vmem, size = 0x40000, scoped, tag = 'input window, operand 3, single buffered']
    #allocation9 [shape = 's32[1]{0}', space=sflag, size = 0x4, scoped, tag = 'scoped memory for tpu_custom_call.1']
    #allocation10 [shape = 'u8[65536]{0}', space=vmem, size = 0x10000, scoped, tag = 'input window, operand 5, single buffered']
    #allocation11 [shape = 'u8[32768]{0}', space=vmem, size = 0x8000, scoped, tag = 'input window, operand 7, single buffered']
    #allocation12 [shape = 's32[1]{0}', space=sflag, size = 0x4, scoped, tag = 'scoped memory for tpu_custom_call.1']
    #allocation13 [shape = 'u8[32768]{0}', space=vmem, size = 0x8000, scoped, tag = 'output window, operand 0']
    %14 = vsyncpa [#allocation3], 0
    %s15 = scalar_lea.sflag [#allocation3], 1
    %16 = vsyncpa %s15, 0
    %17 = vsyncpa [#allocation6], 0
    %18 = vsyncpa [#allocation9], 0
    %19 = vsyncpa [#allocation12], 0
    %20 = vsyncpa [#allocation4], 0
    %s21 = scalar_lea.sflag [#allocation4], 1
    %22 = vsyncpa %s21, 0
    loop: start=0, step=1, limit=4
    $region2: #{tpu_custom_call.1} parent=1 // loop_pre_header
      _
    $region3: #{tpu_custom_call.1} parent=1 // loop_header
      %s24 = sphi 0, %s28
      %p25 = scmp.ge.s32.totalorder %s24, 4
      %s34 = sphi 0, %s36
      %s37 = sphi 0, %s34
      %s38 = sphi 0, %s37
      %s54 = sphi 0, %s38
      %s58 = sphi 0, %s58
      %s60 = sphi 0, %s58
      %s61 = sphi 0, %s60
      %s75 = sphi 0, %s61
      %s79 = sphi 0, %s79
      %s81 = sphi 0, %s79
      %s82 = sphi 0, %s81
      %s96 = sphi 0, %s82
      %s100 = sphi 0, %s100
      %s102 = sphi 0, %s100
      %s103 = sphi 0, %s102
      %s117 = sphi 0, %s103
      %s121 = sphi 0, %s121
      %s123 = sphi 0, %s121
      %s124 = sphi 0, %s123
      %s138 = sphi 0, %s124
      %s142 = sphi 0, %s142
      %s144 = sphi 0, %s142
      %s145 = sphi 0, %s144
      %s159 = sphi 0, %s145
      %s163 = sphi 0, %s163
      %s165 = sphi 0, %s163
      %s166 = sphi 0, %s165
      %s180 = sphi 0, %s166
      %s184 = sphi 0, %s184
      %s186 = sphi 0, %s184
      %s187 = sphi 0, %s186
      %s201 = sphi 0, %s187
      %s205 = sphi 0, %s205
      %s207 = sphi 0, %s205
      %s208 = sphi 0, %s207
      %s222 = sphi 0, %s208
      %s228 = sphi 0, %s230
      %s231 = sphi 0, %s228
      %s232 = sphi 0, %s231
      %s248 = sphi 0, %s232
    $region4: #{tpu_custom_call.1} parent=1 // loop_header_branch
      %27 = sbr.rel (%p25) target = $region8
    $region5: #{tpu_custom_call.1} parent=1 // loop_body
      %s29 = ssub.s32 %s24, 1
      %s30 = ssub.s32 %s24, 2
      %s31 = sadd.s32 %s24, 1
      %s32 = ssub.s32 %s24, %s31
      %p33 = scmp.eq.s32.totalorder %s32, 0
      %s35 = sadd.s32 %s34, 1
      %s36 = scalar_select %p33, %s34, %s35
      %p39 = pneg %p33
      %p40 = scmp.eq.s32.totalorder %s24, 1
      %p41 = por %p39, %p40
      %p42 = scmp.ne.s32.totalorder %s34, %s37
      %p43 = scmp.eq.s32.totalorder %s24, 0
      %p44 = por %p42, %p43
      %p45 = scmp.ne.s32.totalorder %s34, %s37
      %p46 = scmp.eq.s32.totalorder %s29, 1
      %p47 = por %p45, %p46
      %p48 = scmp.ne.s32.totalorder %s37, %s38
      %p49 = scmp.eq.s32.totalorder %s29, 0
      %p50 = por %p48, %p49
      %p51 = scmp.ne.s32.totalorder %s37, %s38
      %p52 = scmp.eq.s32.totalorder %s30, 1
      %p53 = por %p51, %p52
      %p55 = scmp.ne.s32.totalorder %s38, %s54
      %p56 = scmp.eq.s32.totalorder %s30, 0
      %p57 = por %p55, %p56
      %s59 = sadd.s32 %s58, 1
      %p62 = scmp.eq.s32.totalorder %s24, 1
      %p63 = scmp.ne.s32.totalorder %s58, %s60
      %p64 = scmp.eq.s32.totalorder %s24, 0
      %p65 = por %p63, %p64
      %p66 = scmp.ne.s32.totalorder %s58, %s60
      %p67 = scmp.eq.s32.totalorder %s29, 1
      %p68 = por %p66, %p67
      %p69 = scmp.ne.s32.totalorder %s60, %s61
      %p70 = scmp.eq.s32.totalorder %s29, 0
      %p71 = por %p69, %p70
      %p72 = scmp.ne.s32.totalorder %s60, %s61
      %p73 = scmp.eq.s32.totalorder %s30, 1
      %p74 = por %p72, %p73
      %p76 = scmp.ne.s32.totalorder %s61, %s75
      %p77 = scmp.eq.s32.totalorder %s30, 0
      %p78 = por %p76, %p77
      %s80 = sadd.s32 %s79, 1
      %p83 = scmp.eq.s32.totalorder %s24, 1
      %p84 = scmp.ne.s32.totalorder %s79, %s81
      %p85 = scmp.eq.s32.totalorder %s24, 0
      %p86 = por %p84, %p85
      %p87 = scmp.ne.s32.totalorder %s79, %s81
      %p88 = scmp.eq.s32.totalorder %s29, 1
      %p89 = por %p87, %p88
      %p90 = scmp.ne.s32.totalorder %s81, %s82
      %p91 = scmp.eq.s32.totalorder %s29, 0
      %p92 = por %p90, %p91
      %p93 = scmp.ne.s32.totalorder %s81, %s82
      %p94 = scmp.eq.s32.totalorder %s30, 1
      %p95 = por %p93, %p94
      %p97 = scmp.ne.s32.totalorder %s82, %s96
      %p98 = scmp.eq.s32.totalorder %s30, 0
      %p99 = por %p97, %p98
      %s101 = sadd.s32 %s100, 1
      %p104 = scmp.eq.s32.totalorder %s24, 1
      %p105 = scmp.ne.s32.totalorder %s100, %s102
      %p106 = scmp.eq.s32.totalorder %s24, 0
      %p107 = por %p105, %p106
      %p108 = scmp.ne.s32.totalorder %s100, %s102
      %p109 = scmp.eq.s32.totalorder %s29, 1
      %p110 = por %p108, %p109
      %p111 = scmp.ne.s32.totalorder %s102, %s103
      %p112 = scmp.eq.s32.totalorder %s29, 0
      %p113 = por %p111, %p112
      %p114 = scmp.ne.s32.totalorder %s102, %s103
      %p115 = scmp.eq.s32.totalorder %s30, 1
      %p116 = por %p114, %p115
      %p118 = scmp.ne.s32.totalorder %s103, %s117
      %p119 = scmp.eq.s32.totalorder %s30, 0
      %p120 = por %p118, %p119
      %s122 = sadd.s32 %s121, 1
      %p125 = scmp.eq.s32.totalorder %s24, 1
      %p126 = scmp.ne.s32.totalorder %s121, %s123
      %p127 = scmp.eq.s32.totalorder %s24, 0
      %p128 = por %p126, %p127
      %p129 = scmp.ne.s32.totalorder %s121, %s123
      %p130 = scmp.eq.s32.totalorder %s29, 1
      %p131 = por %p129, %p130
      %p132 = scmp.ne.s32.totalorder %s123, %s124
      %p133 = scmp.eq.s32.totalorder %s29, 0
      %p134 = por %p132, %p133
      %p135 = scmp.ne.s32.totalorder %s123, %s124
      %p136 = scmp.eq.s32.totalorder %s30, 1
      %p137 = por %p135, %p136
      %p139 = scmp.ne.s32.totalorder %s124, %s138
      %p140 = scmp.eq.s32.totalorder %s30, 0
      %p141 = por %p139, %p140
      %s143 = sadd.s32 %s142, 1
      %p146 = scmp.eq.s32.totalorder %s24, 1
      %p147 = scmp.ne.s32.totalorder %s142, %s144
      %p148 = scmp.eq.s32.totalorder %s24, 0
      %p149 = por %p147, %p148
      %p150 = scmp.ne.s32.totalorder %s142, %s144
      %p151 = scmp.eq.s32.totalorder %s29, 1
      %p152 = por %p150, %p151
      %p153 = scmp.ne.s32.totalorder %s144, %s145
      %p154 = scmp.eq.s32.totalorder %s29, 0
      %p155 = por %p153, %p154
      %p156 = scmp.ne.s32.totalorder %s144, %s145
      %p157 = scmp.eq.s32.totalorder %s30, 1
      %p158 = por %p156, %p157
      %p160 = scmp.ne.s32.totalorder %s145, %s159
      %p161 = scmp.eq.s32.totalorder %s30, 0
      %p162 = por %p160, %p161
      %s164 = sadd.s32 %s163, 1
      %p167 = scmp.eq.s32.totalorder %s24, 1
      %p168 = scmp.ne.s32.totalorder %s163, %s165
      %p169 = scmp.eq.s32.totalorder %s24, 0
      %p170 = por %p168, %p169
      %p171 = scmp.ne.s32.totalorder %s163, %s165
      %p172 = scmp.eq.s32.totalorder %s29, 1
      %p173 = por %p171, %p172
      %p174 = scmp.ne.s32.totalorder %s165, %s166
      %p175 = scmp.eq.s32.totalorder %s29, 0
      %p176 = por %p174, %p175
      %p177 = scmp.ne.s32.totalorder %s165, %s166
      %p178 = scmp.eq.s32.totalorder %s30, 1
      %p179 = por %p177, %p178
      %p181 = scmp.ne.s32.totalorder %s166, %s180
      %p182 = scmp.eq.s32.totalorder %s30, 0
      %p183 = por %p181, %p182
      %s185 = sadd.s32 %s184, 1
      %p188 = scmp.eq.s32.totalorder %s24, 1
      %p189 = scmp.ne.s32.totalorder %s184, %s186
      %p190 = scmp.eq.s32.totalorder %s24, 0
      %p191 = por %p189, %p190
      %p192 = scmp.ne.s32.totalorder %s184, %s186
      %p193 = scmp.eq.s32.totalorder %s29, 1
      %p194 = por %p192, %p193
      %p195 = scmp.ne.s32.totalorder %s186, %s187
      %p196 = scmp.eq.s32.totalorder %s29, 0
      %p197 = por %p195, %p196
      %p198 = scmp.ne.s32.totalorder %s186, %s187
      %p199 = scmp.eq.s32.totalorder %s30, 1
      %p200 = por %p198, %p199
      %p202 = scmp.ne.s32.totalorder %s187, %s201
      %p203 = scmp.eq.s32.totalorder %s30, 0
      %p204 = por %p202, %p203
      %s206 = sadd.s32 %s205, 1
      %p209 = scmp.eq.s32.totalorder %s24, 1
      %p210 = scmp.ne.s32.totalorder %s205, %s207
      %p211 = scmp.eq.s32.totalorder %s24, 0
      %p212 = por %p210, %p211
      %p213 = scmp.ne.s32.totalorder %s205, %s207
      %p214 = scmp.eq.s32.totalorder %s29, 1
      %p215 = por %p213, %p214
      %p216 = scmp.ne.s32.totalorder %s207, %s208
      %p217 = scmp.eq.s32.totalorder %s29, 0
      %p218 = por %p216, %p217
      %p219 = scmp.ne.s32.totalorder %s207, %s208
      %p220 = scmp.eq.s32.totalorder %s30, 1
      %p221 = por %p219, %p220
      %p223 = scmp.ne.s32.totalorder %s208, %s222
      %p224 = scmp.eq.s32.totalorder %s30, 0
      %p225 = por %p223, %p224
      %s226 = ssub.s32 %s24, %s31
      %p227 = scmp.eq.s32.totalorder %s226, 0
      %s229 = sadd.s32 %s228, 1
      %s230 = scalar_select %p227, %s228, %s229
      %p233 = pneg %p227
      %p234 = scmp.eq.s32.totalorder %s24, 1
      %p235 = por %p233, %p234
      %p236 = scmp.ne.s32.totalorder %s228, %s231
      %p237 = scmp.eq.s32.totalorder %s24, 0
      %p238 = por %p236, %p237
      %p239 = scmp.ne.s32.totalorder %s228, %s231
      %p240 = scmp.eq.s32.totalorder %s29, 1
      %p241 = por %p239, %p240
      %p242 = scmp.ne.s32.totalorder %s231, %s232
      %p243 = scmp.eq.s32.totalorder %s29, 0
      %p244 = por %p242, %p243
      %p245 = scmp.ne.s32.totalorder %s231, %s232
      %p246 = scmp.eq.s32.totalorder %s30, 1
      %p247 = por %p245, %p246
      %p249 = scmp.ne.s32.totalorder %s232, %s248
      %p250 = scmp.eq.s32.totalorder %s30, 0
      %p251 = por %p249, %p250
      %p252 = scmp.le.s32.totalorder 1, %s24
      %p253 = scmp.lt.s32.totalorder %s24, 3
      %p254 = pnand %p252, %p253
      %p255 = pneg %p254
      // Predicated region
      $region9: #{tpu_custom_call.1} parent=5 // pred_check
        _
      $region10: #{tpu_custom_call.1} parent=5 // pred_check_branch
        %257 = sbr.rel (%p254) target = $region12
      $region11: #{tpu_custom_call.1} parent=5 // pred_region
        %s258 = ssub.s32 %s24, 1
        // Predicated region
        $region13: #{tpu_custom_call.1} parent=11 // pred_check
          %p259 = pneg %p71
        $region14: #{tpu_custom_call.1} parent=11 // pred_check_branch
          %261 = sbr.rel (%p259) target = $region16
        $region15: #{tpu_custom_call.1} parent=11 // pred_region
          %s263 = ssub.s32 8192, 8192
          %264 = vsyncadd [#allocation6], %s263
          %s265 = sshll.u32 [#allocation5], 4
          %s266 = int_to_ptr.vmem [resolvable:$true] %s265
          %271 = dma.hbm_to_vmem [thread:$0]  %s1, 8192, %s266, [#allocation6], 256, 256, 16
        $region16: #{tpu_custom_call.1} parent=11 // pred_fallthru
          _
        // Predicated region
        $region17: #{tpu_custom_call.1} parent=11 // pred_check
          %p272 = pneg %p92
        $region18: #{tpu_custom_call.1} parent=11 // pred_check_branch
          %274 = sbr.rel (%p272) target = $region20
        $region19: #{tpu_custom_call.1} parent=11 // pred_region
          %s276 = ssub.s32 64, 64
          %277 = vsyncadd [#allocation6], %s276
          %s279 = sshll.u32 [#allocation7], 4
          %s280 = int_to_ptr.vmem [resolvable:$true] %s279
          %282 = dma.hbm_to_vmem [thread:$0]  %s2, 64, %s280, [#allocation6]
        $region20: #{tpu_custom_call.1} parent=11 // pred_fallthru
          _
        // Predicated region
        $region21: #{tpu_custom_call.1} parent=11 // pred_check
          %p283 = pneg %p113
        $region22: #{tpu_custom_call.1} parent=11 // pred_check_branch
          %285 = sbr.rel (%p283) target = $region24
        $region23: #{tpu_custom_call.1} parent=11 // pred_region
          %s287 = ssub.s32 8192, 8192
          %288 = vsyncadd [#allocation9], %s287
          %s289 = sshll.u32 [#allocation8], 4
          %s290 = int_to_ptr.vmem [resolvable:$true] %s289
          %295 = dma.hbm_to_vmem [thread:$0]  %s3, 8192, %s290, [#allocation9], 128, 128, 8
        $region24: #{tpu_custom_call.1} parent=11 // pred_fallthru
          _
        // Predicated region
        $region25: #{tpu_custom_call.1} parent=11 // pred_check
          %p296 = pneg %p134
        $region26: #{tpu_custom_call.1} parent=11 // pred_check_branch
          %298 = sbr.rel (%p296) target = $region28
        $region27: #{tpu_custom_call.1} parent=11 // pred_region
          _
        $region28: #{tpu_custom_call.1} parent=11 // pred_fallthru
          _
        // Predicated region
        $region29: #{tpu_custom_call.1} parent=11 // pred_check
          %p299 = pneg %p155
        $region30: #{tpu_custom_call.1} parent=11 // pred_check_branch
          %301 = sbr.rel (%p299) target = $region32
        $region31: #{tpu_custom_call.1} parent=11 // pred_region
          %s303 = ssub.s32 2048, 2048
          %304 = vsyncadd [#allocation9], %s303
          %s305 = sshll.u32 [#allocation10], 4
          %s306 = int_to_ptr.vmem [resolvable:$true] %s305
          %311 = dma.hbm_to_vmem [thread:$0]  %s5, 2048, %s306, [#allocation9], 64, 64, 4
        $region32: #{tpu_custom_call.1} parent=11 // pred_fallthru
          _
        // Predicated region
        $region33: #{tpu_custom_call.1} parent=11 // pred_check
          %p312 = pneg %p176
        $region34: #{tpu_custom_call.1} parent=11 // pred_check_branch
          %314 = sbr.rel (%p312) target = $region36
        $region35: #{tpu_custom_call.1} parent=11 // pred_region
          _
        $region36: #{tpu_custom_call.1} parent=11 // pred_fallthru
          _
        // Predicated region
        $region37: #{tpu_custom_call.1} parent=11 // pred_check
          %p315 = pneg %p197
        $region38: #{tpu_custom_call.1} parent=11 // pred_check_branch
          %317 = sbr.rel (%p315) target = $region40
        $region39: #{tpu_custom_call.1} parent=11 // pred_region
          %s319 = ssub.s32 1024, 1024
          %320 = vsyncadd [#allocation12], %s319
          %s321 = sshll.u32 [#allocation11], 4
          %s322 = int_to_ptr.vmem [resolvable:$true] %s321
          %327 = dma.hbm_to_vmem [thread:$0]  %s7, 1024, %s322, [#allocation12], 64, 64, 4
        $region40: #{tpu_custom_call.1} parent=11 // pred_fallthru
          _
        // Predicated region
        $region41: #{tpu_custom_call.1} parent=11 // pred_check
          %p328 = pneg %p218
        $region42: #{tpu_custom_call.1} parent=11 // pred_check_branch
          %330 = sbr.rel (%p328) target = $region44
        $region43: #{tpu_custom_call.1} parent=11 // pred_region
          _
        $region44: #{tpu_custom_call.1} parent=11 // pred_fallthru
          _
      $region12: #{tpu_custom_call.1} parent=5 // pred_fallthru
        _
      %p331 = scmp.lt.s32.totalorder %s24, 2
      // Predicated region
      $region45: #{tpu_custom_call.1} parent=5 // pred_check
        %p332 = pneg %p331
      $region46: #{tpu_custom_call.1} parent=5 // pred_check_branch
        %334 = sbr.rel (%p332) target = $region48
      $region47: #{tpu_custom_call.1} parent=5 // pred_region
        // Predicated region
        $region49: #{tpu_custom_call.1} parent=47 // pred_check
          %p335 = pneg %p44
        $region50: #{tpu_custom_call.1} parent=47 // pred_check_branch
          %337 = sbr.rel (%p335) target = $region52
        $region51: #{tpu_custom_call.1} parent=47 // pred_region
          %s338 = sand.u32 %s34, 1
          %s339 = scalar_lea.sflag [#allocation3], %s338
          %s340 = sand.u32 %s34, 1
          %s341 = smul.addr %s340, 64
          %s342 = scalar_lea.vmem [#allocation2], %s341
          %s343 = smul.u32 4, %s24
          %s345 = ssub.s32 1024, 1024
          %346 = vsyncadd %s339, %s345
          %s347 = smul.addr %s343, 2
          %s348 = smul.addr %s347, 128
          %s349 = scalar_lea.hbm %s0, %s348
          %s350 = sshll.u32 %s342, 4
          %s351 = int_to_ptr.vmem [resolvable:$true] %s350
          %356 = dma.hbm_to_vmem [thread:$0]  %s349, 1024, %s351, %s339, 256, 256, 16
        $region52: #{tpu_custom_call.1} parent=47 // pred_fallthru
          _
      $region48: #{tpu_custom_call.1} parent=5 // pred_fallthru
        _
      %p357 = scmp.le.s32.totalorder 1, %s24
      %p358 = scmp.lt.s32.totalorder %s24, 3
      %p359 = pnand %p357, %p358
      %p360 = pneg %p359
      // Predicated region
      $region53: #{tpu_custom_call.1} parent=5 // pred_check
        _
      $region54: #{tpu_custom_call.1} parent=5 // pred_check_branch
        %362 = sbr.rel (%p359) target = $region56
      $region55: #{tpu_custom_call.1} parent=5 // pred_region
        %s363 = ssub.s32 %s24, 1
        %s364 = sand.u32 %s37, 1
        %s365 = scalar_lea.sflag [#allocation3], %s364
        %s366 = sand.u32 %s37, 1
        %s367 = smul.addr %s366, 64
        %s368 = scalar_lea.vmem [#allocation2], %s367
        // Predicated region
        $region57: #{tpu_custom_call.1} parent=55 // pred_check
          %p369 = pneg %p50
        $region58: #{tpu_custom_call.1} parent=55 // pred_check_branch
          %371 = sbr.rel (%p369) target = $region60
        $region59: #{tpu_custom_call.1} parent=55 // pred_region
          %372 = dma.done %s365, 1024
        $region60: #{tpu_custom_call.1} parent=55 // pred_fallthru
          _
        // Predicated region
        $region61: #{tpu_custom_call.1} parent=55 // pred_check
          %p373 = pneg %p71
        $region62: #{tpu_custom_call.1} parent=55 // pred_check_branch
          %375 = sbr.rel (%p373) target = $region64
        $region63: #{tpu_custom_call.1} parent=55 // pred_region
          %376 = dma.done [#allocation6], 8192
        $region64: #{tpu_custom_call.1} parent=55 // pred_fallthru
          _
        // Predicated region
        $region65: #{tpu_custom_call.1} parent=55 // pred_check
          %p377 = pneg %p92
        $region66: #{tpu_custom_call.1} parent=55 // pred_check_branch
          %379 = sbr.rel (%p377) target = $region68
        $region67: #{tpu_custom_call.1} parent=55 // pred_region
          %380 = dma.done [#allocation6], 64
        $region68: #{tpu_custom_call.1} parent=55 // pred_fallthru
          _
        // Predicated region
        $region69: #{tpu_custom_call.1} parent=55 // pred_check
          %p381 = pneg %p113
        $region70: #{tpu_custom_call.1} parent=55 // pred_check_branch
          %383 = sbr.rel (%p381) target = $region72
        $region71: #{tpu_custom_call.1} parent=55 // pred_region
          %384 = dma.done [#allocation9], 8192
        $region72: #{tpu_custom_call.1} parent=55 // pred_fallthru
          _
        // Predicated region
        $region73: #{tpu_custom_call.1} parent=55 // pred_check
          %p385 = pneg %p155
        $region74: #{tpu_custom_call.1} parent=55 // pred_check_branch
          %387 = sbr.rel (%p385) target = $region76
        $region75: #{tpu_custom_call.1} parent=55 // pred_region
          %388 = dma.done [#allocation9], 2048
        $region76: #{tpu_custom_call.1} parent=55 // pred_fallthru
          _
        // Predicated region
        $region77: #{tpu_custom_call.1} parent=55 // pred_check
          %p389 = pneg %p197
        $region78: #{tpu_custom_call.1} parent=55 // pred_check_branch
          %391 = sbr.rel (%p389) target = $region80
        $region79: #{tpu_custom_call.1} parent=55 // pred_region
          %392 = dma.done [#allocation12], 1024
        $region80: #{tpu_custom_call.1} parent=55 // pred_fallthru
          _
        %s393 = sand.u32 %s37, 1
        %s394 = scalar_lea.sflag [#allocation3], %s393
        %s395 = sand.u32 %s37, 1
        %s396 = smul.addr %s395, 64
        %s397 = scalar_lea.vmem [#allocation2], %s396
        %p398 = pneg %p50
        %p399 = pneg %p47
        %p400 = pneg %p71
        %p401 = pneg %p68
        %p402 = pneg %p92
        %p403 = pneg %p89
        %p404 = pneg %p113
        %p405 = pneg %p110
        %p406 = pneg %p134
        %p407 = pneg %p131
        %p408 = pneg %p155
        %p409 = pneg %p152
        %p410 = pneg %p176
        %p411 = pneg %p173
        %p412 = pneg %p197
        %p413 = pneg %p194
        %p414 = pneg %p218
        %p415 = pneg %p215
        %p416 = pneg %p244
        %p417 = pneg %p241
        %s418 = sand.u32 %s231, 1
        %s419 = scalar_lea.sflag [#allocation4], %s418
        %s420 = sand.u32 %s231, 1
        %s421 = smul.addr %s420, 32
        %s422 = scalar_lea.vmem [#allocation13], %s421
        %s423 = smul.u32 4, %s29
        %s424 = smul.u32 4, %s29
        %v426 = vld [vmem:[%s368] sm:$0xff]
        %v427 = vld [vmem:[%s368 + $0x8] sm:$0xff]
        %v428 = vld [vmem:[%s368 + $0x10] sm:$0xff]
        %v429 = vld [vmem:[%s368 + $0x18] sm:$0xff]
        %v430 = vld [vmem:[%s368 + $0x20] sm:$0xff]
        %v431 = vld [vmem:[%s368 + $0x28] sm:$0xff]
        %v432 = vld [vmem:[%s368 + $0x30] sm:$0xff]
        %v433 = vld [vmem:[%s368 + $0x38] sm:$0xff]
        %v434 = vpack.c.bf16 %v428, %v426
        %v435 = vpack.c.bf16 %v429, %v427
        %v436 = vpack.c.bf16 %v432, %v430
        %v437 = vpack.c.bf16 %v433, %v431
        %v438 = vld [vmem:[#allocation5] sm:$0xff]
        %v439 = vld [vmem:[#allocation5 + $0x8] sm:$0xff]
        %v440 = vld [vmem:[#allocation5 + $0x10] sm:$0xff]
        %v441 = vld [vmem:[#allocation5 + $0x18] sm:$0xff]
        %v442 = vld [vmem:[#allocation5 + $0x20] sm:$0xff]
        %v443 = vld [vmem:[#allocation5 + $0x28] sm:$0xff]
        %v444 = vld [vmem:[#allocation5 + $0x30] sm:$0xff]
        %v445 = vld [vmem:[#allocation5 + $0x38] sm:$0xff]
        %v446 = vld [vmem:[#allocation5 + $0x40] sm:$0xff]
        %v447 = vld [vmem:[#allocation5 + $0x48] sm:$0xff]
        %v448 = vld [vmem:[#allocation5 + $0x50] sm:$0xff]
        %v449 = vld [vmem:[#allocation5 + $0x58] sm:$0xff]
        %v450 = vld [vmem:[#allocation5 + $0x60] sm:$0xff]
        %v451 = vld [vmem:[#allocation5 + $0x68] sm:$0xff]
        %v452 = vld [vmem:[#allocation5 + $0x70] sm:$0xff]
        %v453 = vld [vmem:[#allocation5 + $0x78] sm:$0xff]
        %v454 = vld [vmem:[#allocation5 + $0x80] sm:$0xff]
        %v455 = vld [vmem:[#allocation5 + $0x88] sm:$0xff]
        %v456 = vld [vmem:[#allocation5 + $0x90] sm:$0xff]
        %v457 = vld [vmem:[#allocation5 + $0x98] sm:$0xff]
        %v458 = vld [vmem:[#allocation5 + $0xa0] sm:$0xff]
        %v459 = vld [vmem:[#allocation5 + $0xa8] sm:$0xff]
        %v460 = vld [vmem:[#allocation5 + $0xb0] sm:$0xff]
        %v461 = vld [vmem:[#allocation5 + $0xb8] sm:$0xff]
        %v462 = vld [vmem:[#allocation5 + $0xc0] sm:$0xff]
        %v463 = vld [vmem:[#allocation5 + $0xc8] sm:$0xff]
        %v464 = vld [vmem:[#allocation5 + $0xd0] sm:$0xff]
        %v465 = vld [vmem:[#allocation5 + $0xd8] sm:$0xff]
        %v466 = vld [vmem:[#allocation5 + $0xe0] sm:$0xff]
        %v467 = vld [vmem:[#allocation5 + $0xe8] sm:$0xff]
        %v468 = vld [vmem:[#allocation5 + $0xf0] sm:$0xff]
        %v469 = vld [vmem:[#allocation5 + $0xf8] sm:$0xff]
        %v470 = vld [vmem:[#allocation5 + $0x100] sm:$0xff]
        %v471 = vld [vmem:[#allocation5 + $0x108] sm:$0xff]
        %v472 = vld [vmem:[#allocation5 + $0x110] sm:$0xff]
        %v473 = vld [vmem:[#allocation5 + $0x118] sm:$0xff]
        %v474 = vld [vmem:[#allocation5 + $0x120] sm:$0xff]
        %v475 = vld [vmem:[#allocation5 + $0x128] sm:$0xff]
        %v476 = vld [vmem:[#allocation5 + $0x130] sm:$0xff]
        %v477 = vld [vmem:[#allocation5 + $0x138] sm:$0xff]
        %v478 = vld [vmem:[#allocation5 + $0x140] sm:$0xff]
        %v479 = vld [vmem:[#allocation5 + $0x148] sm:$0xff]
        %v480 = vld [vmem:[#allocation5 + $0x150] sm:$0xff]
        %v481 = vld [vmem:[#allocation5 + $0x158] sm:$0xff]
        %v482 = vld [vmem:[#allocation5 + $0x160] sm:$0xff]
        %v483 = vld [vmem:[#allocation5 + $0x168] sm:$0xff]
        %v484 = vld [vmem:[#allocation5 + $0x170] sm:$0xff]
        %v485 = vld [vmem:[#allocation5 + $0x178] sm:$0xff]
        %v486 = vld [vmem:[#allocation5 + $0x180] sm:$0xff]
        %v487 = vld [vmem:[#allocation5 + $0x188] sm:$0xff]
        %v488 = vld [vmem:[#allocation5 + $0x190] sm:$0xff]
        %v489 = vld [vmem:[#allocation5 + $0x198] sm:$0xff]
        %v490 = vld [vmem:[#allocation5 + $0x1a0] sm:$0xff]
        %v491 = vld [vmem:[#allocation5 + $0x1a8] sm:$0xff]
        %v492 = vld [vmem:[#allocation5 + $0x1b0] sm:$0xff]
        %v493 = vld [vmem:[#allocation5 + $0x1b8] sm:$0xff]
        %v494 = vld [vmem:[#allocation5 + $0x1c0] sm:$0xff]
        %v495 = vld [vmem:[#allocation5 + $0x1c8] sm:$0xff]
        %v496 = vld [vmem:[#allocation5 + $0x1d0] sm:$0xff]
        %v497 = vld [vmem:[#allocation5 + $0x1d8] sm:$0xff]
        %v498 = vld [vmem:[#allocation5 + $0x1e0] sm:$0xff]
        %v499 = vld [vmem:[#allocation5 + $0x1e8] sm:$0xff]
        %v500 = vld [vmem:[#allocation5 + $0x1f0] sm:$0xff]
        %v501 = vld [vmem:[#allocation5 + $0x1f8] sm:$0xff]
        %v502 = vld [vmem:[#allocation7] sm:$0xf]
        %v504 = vlaneseq
        %v505 = vshrl.u32 %v504, 7
        %v506 = vsub.s32 0, %v505
        %v507 = vrot.slane %v502, %v506
        %v508 = vlaneseq
        %v509 = vshrl.u32 %v508, 7
        %v510 = vsub.s32 1, %v509
        %v511 = vrot.slane %v502, %v510
        %v512 = vlaneseq
        %v513 = vshrl.u32 %v512, 7
        %v514 = vsub.s32 2, %v513
        %v515 = vrot.slane %v502, %v514
        %v516 = vlaneseq
        %v517 = vshrl.u32 %v516, 7
        %v518 = vsub.s32 3, %v517
        %v519 = vrot.slane %v502, %v518
        %v588 = vunpack.c.l.b16 %v438
        %v589 = vunpack.c.h.b16 %v438
        %v590 = vunpack.c.l.b16 %v439
        %v591 = vunpack.c.h.b16 %v439
        %v592 = vunpack.c.l.b16 %v440
        %v593 = vunpack.c.h.b16 %v440
        %v594 = vunpack.c.l.b16 %v441
        %v595 = vunpack.c.h.b16 %v441
        %v596 = vunpack.c.l.b16 %v442
        %v597 = vunpack.c.h.b16 %v442
        %v598 = vunpack.c.l.b16 %v443
        %v599 = vunpack.c.h.b16 %v443
        %v600 = vunpack.c.l.b16 %v444
        %v601 = vunpack.c.h.b16 %v444
        %v602 = vunpack.c.l.b16 %v445
        %v603 = vunpack.c.h.b16 %v445
        %v604 = vunpack.c.l.b16 %v446
        %v605 = vunpack.c.h.b16 %v446
        %v606 = vunpack.c.l.b16 %v447
        %v607 = vunpack.c.h.b16 %v447
        %v608 = vunpack.c.l.b16 %v448
        %v609 = vunpack.c.h.b16 %v448
        %v610 = vunpack.c.l.b16 %v449
        %v611 = vunpack.c.h.b16 %v449
        %v612 = vunpack.c.l.b16 %v450
        %v613 = vunpack.c.h.b16 %v450
        %v614 = vunpack.c.l.b16 %v451
        %v615 = vunpack.c.h.b16 %v451
        %v616 = vunpack.c.l.b16 %v452
        %v617 = vunpack.c.h.b16 %v452
        %v618 = vunpack.c.l.b16 %v453
        %v619 = vunpack.c.h.b16 %v453
        %v620 = vunpack.c.l.b16 %v454
        %v621 = vunpack.c.h.b16 %v454
        %v622 = vunpack.c.l.b16 %v455
        %v623 = vunpack.c.h.b16 %v455
        %v624 = vunpack.c.l.b16 %v456
        %v625 = vunpack.c.h.b16 %v456
        %v626 = vunpack.c.l.b16 %v457
        %v627 = vunpack.c.h.b16 %v457
        %v628 = vunpack.c.l.b16 %v458
        %v629 = vunpack.c.h.b16 %v458
        %v630 = vunpack.c.l.b16 %v459
        %v631 = vunpack.c.h.b16 %v459
        %v632 = vunpack.c.l.b16 %v460
        %v633 = vunpack.c.h.b16 %v460
        %v634 = vunpack.c.l.b16 %v461
        %v635 = vunpack.c.h.b16 %v461
        %v636 = vunpack.c.l.b16 %v462
        %v637 = vunpack.c.h.b16 %v462
        %v638 = vunpack.c.l.b16 %v463
        %v639 = vunpack.c.h.b16 %v463
        %v640 = vunpack.c.l.b16 %v464
        %v641 = vunpack.c.h.b16 %v464
        %v642 = vunpack.c.l.b16 %v465
        %v643 = vunpack.c.h.b16 %v465
        %v644 = vunpack.c.l.b16 %v466
        %v645 = vunpack.c.h.b16 %v466
        %v646 = vunpack.c.l.b16 %v467
        %v647 = vunpack.c.h.b16 %v467
        %v648 = vunpack.c.l.b16 %v468
        %v649 = vunpack.c.h.b16 %v468
        %v650 = vunpack.c.l.b16 %v469
        %v651 = vunpack.c.h.b16 %v469
        %v652 = vunpack.c.l.b16 %v470
        %v653 = vunpack.c.h.b16 %v470
        %v654 = vunpack.c.l.b16 %v471
        %v655 = vunpack.c.h.b16 %v471
        %v656 = vunpack.c.l.b16 %v472
        %v657 = vunpack.c.h.b16 %v472
        %v658 = vunpack.c.l.b16 %v473
        %v659 = vunpack.c.h.b16 %v473
        %v660 = vunpack.c.l.b16 %v474
        %v661 = vunpack.c.h.b16 %v474
        %v662 = vunpack.c.l.b16 %v475
        %v663 = vunpack.c.h.b16 %v475
        %v664 = vunpack.c.l.b16 %v476
        %v665 = vunpack.c.h.b16 %v476
        %v666 = vunpack.c.l.b16 %v477
        %v667 = vunpack.c.h.b16 %v477
        %v668 = vunpack.c.l.b16 %v478
        %v669 = vunpack.c.h.b16 %v478
        %v670 = vunpack.c.l.b16 %v479
        %v671 = vunpack.c.h.b16 %v479
        %v672 = vunpack.c.l.b16 %v480
        %v673 = vunpack.c.h.b16 %v480
        %v674 = vunpack.c.l.b16 %v481
        %v675 = vunpack.c.h.b16 %v481
        %v676 = vunpack.c.l.b16 %v482
        %v677 = vunpack.c.h.b16 %v482
        %v678 = vunpack.c.l.b16 %v483
        %v679 = vunpack.c.h.b16 %v483
        %v680 = vunpack.c.l.b16 %v484
        %v681 = vunpack.c.h.b16 %v484
        %v682 = vunpack.c.l.b16 %v485
        %v683 = vunpack.c.h.b16 %v485
        %v684 = vunpack.c.l.b16 %v486
        %v685 = vunpack.c.h.b16 %v486
        %v686 = vunpack.c.l.b16 %v487
        %v687 = vunpack.c.h.b16 %v487
        %v688 = vunpack.c.l.b16 %v488
        %v689 = vunpack.c.h.b16 %v488
        %v690 = vunpack.c.l.b16 %v489
        %v691 = vunpack.c.h.b16 %v489
        %v692 = vunpack.c.l.b16 %v490
        %v693 = vunpack.c.h.b16 %v490
        %v694 = vunpack.c.l.b16 %v491
        %v695 = vunpack.c.h.b16 %v491
        %v696 = vunpack.c.l.b16 %v492
        %v697 = vunpack.c.h.b16 %v492
        %v698 = vunpack.c.l.b16 %v493
        %v699 = vunpack.c.h.b16 %v493
        %v700 = vunpack.c.l.b16 %v494
        %v701 = vunpack.c.h.b16 %v494
        %v702 = vunpack.c.l.b16 %v495
        %v703 = vunpack.c.h.b16 %v495
        %v704 = vunpack.c.l.b16 %v496
        %v705 = vunpack.c.h.b16 %v496
        %v706 = vunpack.c.l.b16 %v497
        %v707 = vunpack.c.h.b16 %v497
        %v708 = vunpack.c.l.b16 %v498
        %v709 = vunpack.c.h.b16 %v498
        %v710 = vunpack.c.l.b16 %v499
        %v711 = vunpack.c.h.b16 %v499
        %v712 = vunpack.c.l.b16 %v500
        %v713 = vunpack.c.h.b16 %v500
        %v714 = vunpack.c.l.b16 %v501
        %v715 = vunpack.c.h.b16 %v501
        %v716 = vpack.c.b16 %v592, %v588
        %v717 = vpack.c.b16 %v593, %v589
        %v718 = vpack.c.b16 %v594, %v590
        %v719 = vpack.c.b16 %v595, %v591
        %v720 = vpack.c.b16 %v600, %v596
        %v721 = vpack.c.b16 %v601, %v597
        %v722 = vpack.c.b16 %v602, %v598
        %v723 = vpack.c.b16 %v603, %v599
        %v724 = vpack.c.b16 %v608, %v604
        %v725 = vpack.c.b16 %v609, %v605
        %v726 = vpack.c.b16 %v610, %v606
        %v727 = vpack.c.b16 %v611, %v607
        %v728 = vpack.c.b16 %v616, %v612
        %v729 = vpack.c.b16 %v617, %v613
        %v730 = vpack.c.b16 %v618, %v614
        %v731 = vpack.c.b16 %v619, %v615
        %v732 = vpack.c.b16 %v624, %v620
        %v733 = vpack.c.b16 %v625, %v621
        %v734 = vpack.c.b16 %v626, %v622
        %v735 = vpack.c.b16 %v627, %v623
        %v736 = vpack.c.b16 %v632, %v628
        %v737 = vpack.c.b16 %v633, %v629
        %v738 = vpack.c.b16 %v634, %v630
        %v739 = vpack.c.b16 %v635, %v631
        %v740 = vpack.c.b16 %v640, %v636
        %v741 = vpack.c.b16 %v641, %v637
        %v742 = vpack.c.b16 %v642, %v638
        %v743 = vpack.c.b16 %v643, %v639
        %v744 = vpack.c.b16 %v648, %v644
        %v745 = vpack.c.b16 %v649, %v645
        %v746 = vpack.c.b16 %v650, %v646
        %v747 = vpack.c.b16 %v651, %v647
        %v748 = vpack.c.b16 %v656, %v652
        %v749 = vpack.c.b16 %v657, %v653
        %v750 = vpack.c.b16 %v658, %v654
        %v751 = vpack.c.b16 %v659, %v655
        %v752 = vpack.c.b16 %v664, %v660
        %v753 = vpack.c.b16 %v665, %v661
        %v754 = vpack.c.b16 %v666, %v662
        %v755 = vpack.c.b16 %v667, %v663
        %v756 = vpack.c.b16 %v672, %v668
        %v757 = vpack.c.b16 %v673, %v669
        %v758 = vpack.c.b16 %v674, %v670
        %v759 = vpack.c.b16 %v675, %v671
        %v760 = vpack.c.b16 %v680, %v676
        %v761 = vpack.c.b16 %v681, %v677
        %v762 = vpack.c.b16 %v682, %v678
        %v763 = vpack.c.b16 %v683, %v679
        %v764 = vpack.c.b16 %v688, %v684
        %v765 = vpack.c.b16 %v689, %v685
        %v766 = vpack.c.b16 %v690, %v686
        %v767 = vpack.c.b16 %v691, %v687
        %v768 = vpack.c.b16 %v696, %v692
        %v769 = vpack.c.b16 %v697, %v693
        %v770 = vpack.c.b16 %v698, %v694
        %v771 = vpack.c.b16 %v699, %v695
        %v772 = vpack.c.b16 %v704, %v700
        %v773 = vpack.c.b16 %v705, %v701
        %v774 = vpack.c.b16 %v706, %v702
        %v775 = vpack.c.b16 %v707, %v703
        %v776 = vpack.c.b16 %v712, %v708
        %v777 = vpack.c.b16 %v713, %v709
        %v778 = vpack.c.b16 %v714, %v710
        %v779 = vpack.c.b16 %v715, %v711
        %844 = vmatprep.subr.bf16.mxu0 %v745
        %845 = vmatpush1.bf16.msra.mxu0 %v744
        %846 = vmatprep.subr.bf16.mxu0 %v741
        %847 = vmatpush1.bf16.msra.mxu0 %v740
        %848 = vmatprep.subr.bf16.mxu0 %v737
        %849 = vmatpush1.bf16.msra.mxu0 %v736
        %850 = vmatprep.subr.bf16.mxu0 %v733
        %851 = vmatpush1.bf16.msra.mxu0 %v732
        %852 = vmatprep.subr.bf16.mxu0 %v729
        %853 = vmatpush1.bf16.msra.mxu0 %v728
        %854 = vmatprep.subr.bf16.mxu0 %v725
        %855 = vmatpush1.bf16.msra.mxu0 %v724
        %856 = vmatprep.subr.bf16.mxu0 %v721
        %857 = vmatpush1.bf16.msra.mxu0 %v720
        %858 = vmatprep.subr.bf16.mxu0 %v717
        %859 = vmatpush1.bf16.msra.mxu0 %v716
        %860 = vmatprep.subr.bf16.mxu0 %v777
        %861 = vmatpush2.bf16.msra.mxu0 %v776
        %862 = vmatprep.subr.bf16.mxu0 %v773
        %863 = vmatpush2.bf16.msra.mxu0 %v772
        %864 = vmatprep.subr.bf16.mxu0 %v769
        %865 = vmatpush2.bf16.msra.mxu0 %v768
        %866 = vmatprep.subr.bf16.mxu0 %v765
        %867 = vmatpush2.bf16.msra.mxu0 %v764
        %868 = vmatprep.subr.bf16.mxu0 %v761
        %869 = vmatpush2.bf16.msra.mxu0 %v760
        %870 = vmatprep.subr.bf16.mxu0 %v757
        %871 = vmatpush2.bf16.msra.mxu0 %v756
        %872 = vmatprep.subr.bf16.mxu0 %v753
        %873 = vmatpush2.bf16.msra.mxu0 %v752
        %874 = vmatprep.subr.bf16.mxu0 %v749
        %875 = vmatpush2.bf16.msra.mxu0 %v748
        %876 = vmatprep.mubr.bf16.mxu0 %v435
        %877 = vmatmul.mubr.bf16.gmra.mxu0 %v434
        %v878 = vpop.f32.mrf.mxu0
        %v879 = vadd.f32 %v507, %v878
        %v880 = vpop.f32.mrf.mxu0
        %v881 = vadd.f32 %v511, %v880
        %v882 = vpop.f32.mrf.mxu0
        %v883 = vadd.f32 %v507, %v882
        %v884 = vpop.f32.mrf.mxu0
        %v885 = vadd.f32 %v511, %v884
        %886 = vmatprep.mubr.bf16.mxu0 %v437
        %887 = vmatmul.mubr.bf16.gmra.mxu0 %v436
        %v888 = vpop.f32.mrf.mxu0
        %v889 = vadd.f32 %v507, %v888
        %v890 = vpop.f32.mrf.mxu0
        %v891 = vadd.f32 %v511, %v890
        %v892 = vpop.f32.mrf.mxu0
        %v893 = vadd.f32 %v507, %v892
        %v894 = vpop.f32.mrf.mxu0
        %v895 = vadd.f32 %v511, %v894
        %896 = vdwg.mxu0
        %897 = vmatprep.subr.bf16.mxu0 %v747
        %898 = vmatpush1.bf16.msra.mxu0 %v746
        %899 = vmatprep.subr.bf16.mxu0 %v743
        %900 = vmatpush1.bf16.msra.mxu0 %v742
        %901 = vmatprep.subr.bf16.mxu0 %v739
        %902 = vmatpush1.bf16.msra.mxu0 %v738
        %903 = vmatprep.subr.bf16.mxu0 %v735
        %904 = vmatpush1.bf16.msra.mxu0 %v734
        %905 = vmatprep.subr.bf16.mxu0 %v731
        %906 = vmatpush1.bf16.msra.mxu0 %v730
        %907 = vmatprep.subr.bf16.mxu0 %v727
        %908 = vmatpush1.bf16.msra.mxu0 %v726
        %909 = vmatprep.subr.bf16.mxu0 %v723
        %910 = vmatpush1.bf16.msra.mxu0 %v722
        %911 = vmatprep.subr.bf16.mxu0 %v719
        %912 = vmatpush1.bf16.msra.mxu0 %v718
        %913 = vmatprep.subr.bf16.mxu0 %v779
        %914 = vmatpush2.bf16.msra.mxu0 %v778
        %915 = vmatprep.subr.bf16.mxu0 %v775
        %916 = vmatpush2.bf16.msra.mxu0 %v774
        %917 = vmatprep.subr.bf16.mxu0 %v771
        %918 = vmatpush2.bf16.msra.mxu0 %v770
        %919 = vmatprep.subr.bf16.mxu0 %v767
        %920 = vmatpush2.bf16.msra.mxu0 %v766
        %921 = vmatprep.subr.bf16.mxu0 %v763
        %922 = vmatpush2.bf16.msra.mxu0 %v762
        %923 = vmatprep.subr.bf16.mxu0 %v759
        %924 = vmatpush2.bf16.msra.mxu0 %v758
        %925 = vmatprep.subr.bf16.mxu0 %v755
        %926 = vmatpush2.bf16.msra.mxu0 %v754
        %927 = vmatprep.subr.bf16.mxu0 %v751
        %928 = vmatpush2.bf16.msra.mxu0 %v750
        %929 = vmatprep.mubr.bf16.mxu0 %v435
        %930 = vmatmul.mubr.bf16.gmra.mxu0 %v434
        %v931 = vpop.f32.mrf.mxu0
        %v932 = vadd.f32 %v515, %v931
        %v933 = vpop.f32.mrf.mxu0
        %v934 = vadd.f32 %v519, %v933
        %v935 = vpop.f32.mrf.mxu0
        %v936 = vadd.f32 %v515, %v935
        %v937 = vpop.f32.mrf.mxu0
        %v938 = vadd.f32 %v519, %v937
        %939 = vmatprep.mubr.bf16.mxu0 %v437
        %940 = vmatmul.mubr.bf16.gmra.mxu0 %v436
        %v941 = vpop.f32.mrf.mxu0
        %v942 = vadd.f32 %v515, %v941
        %v943 = vpop.f32.mrf.mxu0
        %v944 = vadd.f32 %v519, %v943
        %v945 = vpop.f32.mrf.mxu0
        %v946 = vadd.f32 %v515, %v945
        %v947 = vpop.f32.mrf.mxu0
        %v948 = vadd.f32 %v519, %v947
        %949 = vdwg.mxu0
        %v950 = vmax.f32 %v879, 0.0
        %v951 = vmax.f32 %v881, 0.0
        %v952 = vmax.f32 %v932, 0.0
        %v953 = vmax.f32 %v934, 0.0
        %v954 = vmax.f32 %v883, 0.0
        %v955 = vmax.f32 %v885, 0.0
        %v956 = vmax.f32 %v936, 0.0
        %v957 = vmax.f32 %v938, 0.0
        %v958 = vmax.f32 %v889, 0.0
        %v959 = vmax.f32 %v891, 0.0
        %v960 = vmax.f32 %v942, 0.0
        %v961 = vmax.f32 %v944, 0.0
        %v962 = vmax.f32 %v893, 0.0
        %v963 = vmax.f32 %v895, 0.0
        %v964 = vmax.f32 %v946, 0.0
        %v965 = vmax.f32 %v948, 0.0
        %v966 = vpack.c.bf16 %v954, %v950
        %v967 = vpack.c.bf16 %v955, %v951
        %v968 = vpack.c.bf16 %v956, %v952
        %v969 = vpack.c.bf16 %v957, %v953
        %v970 = vpack.c.bf16 %v962, %v958
        %v971 = vpack.c.bf16 %v963, %v959
        %v972 = vpack.c.bf16 %v964, %v960
        %v973 = vpack.c.bf16 %v965, %v961
        %v974 = vld [vmem:[#allocation8] sm:$0xff]
        %v975 = vld [vmem:[#allocation8 + $0x8] sm:$0xff]
        %v976 = vld [vmem:[#allocation8 + $0x10] sm:$0xff]
        %v977 = vld [vmem:[#allocation8 + $0x18] sm:$0xff]
        %v978 = vld [vmem:[#allocation8 + $0x20] sm:$0xff]
        %v979 = vld [vmem:[#allocation8 + $0x28] sm:$0xff]
        %v980 = vld [vmem:[#allocation8 + $0x30] sm:$0xff]
        %v981 = vld [vmem:[#allocation8 + $0x38] sm:$0xff]
        %v982 = vld [vmem:[#allocation8 + $0x40] sm:$0xff]
        %v983 = vld [vmem:[#allocation8 + $0x48] sm:$0xff]
        %v984 = vld [vmem:[#allocation8 + $0x50] sm:$0xff]
        %v985 = vld [vmem:[#allocation8 + $0x58] sm:$0xff]
        %v986 = vld [vmem:[#allocation8 + $0x60] sm:$0xff]
        %v987 = vld [vmem:[#allocation8 + $0x68] sm:$0xff]
        %v988 = vld [vmem:[#allocation8 + $0x70] sm:$0xff]
        %v989 = vld [vmem:[#allocation8 + $0x78] sm:$0xff]
        %v990 = vld [vmem:[#allocation8 + $0x80] sm:$0xff]
        %v991 = vld [vmem:[#allocation8 + $0x88] sm:$0xff]
        %v992 = vld [vmem:[#allocation8 + $0x90] sm:$0xff]
        %v993 = vld [vmem:[#allocation8 + $0x98] sm:$0xff]
        %v994 = vld [vmem:[#allocation8 + $0xa0] sm:$0xff]
        %v995 = vld [vmem:[#allocation8 + $0xa8] sm:$0xff]
        %v996 = vld [vmem:[#allocation8 + $0xb0] sm:$0xff]
        %v997 = vld [vmem:[#allocation8 + $0xb8] sm:$0xff]
        %v998 = vld [vmem:[#allocation8 + $0xc0] sm:$0xff]
        %v999 = vld [vmem:[#allocation8 + $0xc8] sm:$0xff]
        %v1000 = vld [vmem:[#allocation8 + $0xd0] sm:$0xff]
        %v1001 = vld [vmem:[#allocation8 + $0xd8] sm:$0xff]
        %v1002 = vld [vmem:[#allocation8 + $0xe0] sm:$0xff]
        %v1003 = vld [vmem:[#allocation8 + $0xe8] sm:$0xff]
        %v1004 = vld [vmem:[#allocation8 + $0xf0] sm:$0xff]
        %v1005 = vld [vmem:[#allocation8 + $0xf8] sm:$0xff]
        %v1006 = vld [vmem:[#allocation8 + $0x100] sm:$0xff]
        %v1007 = vld [vmem:[#allocation8 + $0x108] sm:$0xff]
        %v1008 = vld [vmem:[#allocation8 + $0x110] sm:$0xff]
        %v1009 = vld [vmem:[#allocation8 + $0x118] sm:$0xff]
        %v1010 = vld [vmem:[#allocation8 + $0x120] sm:$0xff]
        %v1011 = vld [vmem:[#allocation8 + $0x128] sm:$0xff]
        %v1012 = vld [vmem:[#allocation8 + $0x130] sm:$0xff]
        %v1013 = vld [vmem:[#allocation8 + $0x138] sm:$0xff]
        %v1014 = vld [vmem:[#allocation8 + $0x140] sm:$0xff]
        %v1015 = vld [vmem:[#allocation8 + $0x148] sm:$0xff]
        %v1016 = vld [vmem:[#allocation8 + $0x150] sm:$0xff]
        %v1017 = vld [vmem:[#allocation8 + $0x158] sm:$0xff]
        %v1018 = vld [vmem:[#allocation8 + $0x160] sm:$0xff]
        %v1019 = vld [vmem:[#allocation8 + $0x168] sm:$0xff]
        %v1020 = vld [vmem:[#allocation8 + $0x170] sm:$0xff]
        %v1021 = vld [vmem:[#allocation8 + $0x178] sm:$0xff]
        %v1022 = vld [vmem:[#allocation8 + $0x180] sm:$0xff]
        %v1023 = vld [vmem:[#allocation8 + $0x188] sm:$0xff]
        %v1024 = vld [vmem:[#allocation8 + $0x190] sm:$0xff]
        %v1025 = vld [vmem:[#allocation8 + $0x198] sm:$0xff]
        %v1026 = vld [vmem:[#allocation8 + $0x1a0] sm:$0xff]
        %v1027 = vld [vmem:[#allocation8 + $0x1a8] sm:$0xff]
        %v1028 = vld [vmem:[#allocation8 + $0x1b0] sm:$0xff]
        %v1029 = vld [vmem:[#allocation8 + $0x1b8] sm:$0xff]
        %v1030 = vld [vmem:[#allocation8 + $0x1c0] sm:$0xff]
        %v1031 = vld [vmem:[#allocation8 + $0x1c8] sm:$0xff]
        %v1032 = vld [vmem:[#allocation8 + $0x1d0] sm:$0xff]
        %v1033 = vld [vmem:[#allocation8 + $0x1d8] sm:$0xff]
        %v1034 = vld [vmem:[#allocation8 + $0x1e0] sm:$0xff]
        %v1035 = vld [vmem:[#allocation8 + $0x1e8] sm:$0xff]
        %v1036 = vld [vmem:[#allocation8 + $0x1f0] sm:$0xff]
        %v1037 = vld [vmem:[#allocation8 + $0x1f8] sm:$0xff]
        %v1038 = vld [vmem:[%s4] sm:$0x3]
        %v1040 = vlaneseq
        %v1041 = vshrl.u32 %v1040, 7
        %v1042 = vsub.s32 0, %v1041
        %v1043 = vrot.slane %v1038, %v1042
        %v1044 = vlaneseq
        %v1045 = vshrl.u32 %v1044, 7
        %v1046 = vsub.s32 1, %v1045
        %v1047 = vrot.slane %v1038, %v1046
        %v1114 = vunpack.c.l.b16 %v974
        %v1115 = vunpack.c.h.b16 %v974
        %v1116 = vunpack.c.l.b16 %v975
        %v1117 = vunpack.c.h.b16 %v975
        %v1118 = vunpack.c.l.b16 %v976
        %v1119 = vunpack.c.h.b16 %v976
        %v1120 = vunpack.c.l.b16 %v977
        %v1121 = vunpack.c.h.b16 %v977
        %v1122 = vunpack.c.l.b16 %v978
        %v1123 = vunpack.c.h.b16 %v978
        %v1124 = vunpack.c.l.b16 %v979
        %v1125 = vunpack.c.h.b16 %v979
        %v1126 = vunpack.c.l.b16 %v980
        %v1127 = vunpack.c.h.b16 %v980
        %v1128 = vunpack.c.l.b16 %v981
        %v1129 = vunpack.c.h.b16 %v981
        %v1130 = vunpack.c.l.b16 %v982
        %v1131 = vunpack.c.h.b16 %v982
        %v1132 = vunpack.c.l.b16 %v983
        %v1133 = vunpack.c.h.b16 %v983
        %v1134 = vunpack.c.l.b16 %v984
        %v1135 = vunpack.c.h.b16 %v984
        %v1136 = vunpack.c.l.b16 %v985
        %v1137 = vunpack.c.h.b16 %v985
        %v1138 = vunpack.c.l.b16 %v986
        %v1139 = vunpack.c.h.b16 %v986
        %v1140 = vunpack.c.l.b16 %v987
        %v1141 = vunpack.c.h.b16 %v987
        %v1142 = vunpack.c.l.b16 %v988
        %v1143 = vunpack.c.h.b16 %v988
        %v1144 = vunpack.c.l.b16 %v989
        %v1145 = vunpack.c.h.b16 %v989
        %v1146 = vunpack.c.l.b16 %v990
        %v1147 = vunpack.c.h.b16 %v990
        %v1148 = vunpack.c.l.b16 %v991
        %v1149 = vunpack.c.h.b16 %v991
        %v1150 = vunpack.c.l.b16 %v992
        %v1151 = vunpack.c.h.b16 %v992
        %v1152 = vunpack.c.l.b16 %v993
        %v1153 = vunpack.c.h.b16 %v993
        %v1154 = vunpack.c.l.b16 %v994
        %v1155 = vunpack.c.h.b16 %v994
        %v1156 = vunpack.c.l.b16 %v995
        %v1157 = vunpack.c.h.b16 %v995
        %v1158 = vunpack.c.l.b16 %v996
        %v1159 = vunpack.c.h.b16 %v996
        %v1160 = vunpack.c.l.b16 %v997
        %v1161 = vunpack.c.h.b16 %v997
        %v1162 = vunpack.c.l.b16 %v998
        %v1163 = vunpack.c.h.b16 %v998
        %v1164 = vunpack.c.l.b16 %v999
        %v1165 = vunpack.c.h.b16 %v999
        %v1166 = vunpack.c.l.b16 %v1000
        %v1167 = vunpack.c.h.b16 %v1000
        %v1168 = vunpack.c.l.b16 %v1001
        %v1169 = vunpack.c.h.b16 %v1001
        %v1170 = vunpack.c.l.b16 %v1002
        %v1171 = vunpack.c.h.b16 %v1002
        %v1172 = vunpack.c.l.b16 %v1003
        %v1173 = vunpack.c.h.b16 %v1003
        %v1174 = vunpack.c.l.b16 %v1004
        %v1175 = vunpack.c.h.b16 %v1004
        %v1176 = vunpack.c.l.b16 %v1005
        %v1177 = vunpack.c.h.b16 %v1005
        %v1178 = vunpack.c.l.b16 %v1006
        %v1179 = vunpack.c.h.b16 %v1006
        %v1180 = vunpack.c.l.b16 %v1007
        %v1181 = vunpack.c.h.b16 %v1007
        %v1182 = vunpack.c.l.b16 %v1008
        %v1183 = vunpack.c.h.b16 %v1008
        %v1184 = vunpack.c.l.b16 %v1009
        %v1185 = vunpack.c.h.b16 %v1009
        %v1186 = vunpack.c.l.b16 %v1010
        %v1187 = vunpack.c.h.b16 %v1010
        %v1188 = vunpack.c.l.b16 %v1011
        %v1189 = vunpack.c.h.b16 %v1011
        %v1190 = vunpack.c.l.b16 %v1012
        %v1191 = vunpack.c.h.b16 %v1012
        %v1192 = vunpack.c.l.b16 %v1013
        %v1193 = vunpack.c.h.b16 %v1013
        %v1194 = vunpack.c.l.b16 %v1014
        %v1195 = vunpack.c.h.b16 %v1014
        %v1196 = vunpack.c.l.b16 %v1015
        %v1197 = vunpack.c.h.b16 %v1015
        %v1198 = vunpack.c.l.b16 %v1016
        %v1199 = vunpack.c.h.b16 %v1016
        %v1200 = vunpack.c.l.b16 %v1017
        %v1201 = vunpack.c.h.b16 %v1017
        %v1202 = vunpack.c.l.b16 %v1018
        %v1203 = vunpack.c.h.b16 %v1018
        %v1204 = vunpack.c.l.b16 %v1019
        %v1205 = vunpack.c.h.b16 %v1019
        %v1206 = vunpack.c.l.b16 %v1020
        %v1207 = vunpack.c.h.b16 %v1020
        %v1208 = vunpack.c.l.b16 %v1021
        %v1209 = vunpack.c.h.b16 %v1021
        %v1210 = vunpack.c.l.b16 %v1022
        %v1211 = vunpack.c.h.b16 %v1022
        %v1212 = vunpack.c.l.b16 %v1023
        %v1213 = vunpack.c.h.b16 %v1023
        %v1214 = vunpack.c.l.b16 %v1024
        %v1215 = vunpack.c.h.b16 %v1024
        %v1216 = vunpack.c.l.b16 %v1025
        %v1217 = vunpack.c.h.b16 %v1025
        %v1218 = vunpack.c.l.b16 %v1026
        %v1219 = vunpack.c.h.b16 %v1026
        %v1220 = vunpack.c.l.b16 %v1027
        %v1221 = vunpack.c.h.b16 %v1027
        %v1222 = vunpack.c.l.b16 %v1028
        %v1223 = vunpack.c.h.b16 %v1028
        %v1224 = vunpack.c.l.b16 %v1029
        %v1225 = vunpack.c.h.b16 %v1029
        %v1226 = vunpack.c.l.b16 %v1030
        %v1227 = vunpack.c.h.b16 %v1030
        %v1228 = vunpack.c.l.b16 %v1031
        %v1229 = vunpack.c.h.b16 %v1031
        %v1230 = vunpack.c.l.b16 %v1032
        %v1231 = vunpack.c.h.b16 %v1032
        %v1232 = vunpack.c.l.b16 %v1033
        %v1233 = vunpack.c.h.b16 %v1033
        %v1234 = vunpack.c.l.b16 %v1034
        %v1235 = vunpack.c.h.b16 %v1034
        %v1236 = vunpack.c.l.b16 %v1035
        %v1237 = vunpack.c.h.b16 %v1035
        %v1238 = vunpack.c.l.b16 %v1036
        %v1239 = vunpack.c.h.b16 %v1036
        %v1240 = vunpack.c.l.b16 %v1037
        %v1241 = vunpack.c.h.b16 %v1037
        %v1242 = vpack.c.b16 %v1116, %v1114
        %v1243 = vpack.c.b16 %v1117, %v1115
        %v1244 = vpack.c.b16 %v1120, %v1118
        %v1245 = vpack.c.b16 %v1121, %v1119
        %v1246 = vpack.c.b16 %v1124, %v1122
        %v1247 = vpack.c.b16 %v1125, %v1123
        %v1248 = vpack.c.b16 %v1128, %v1126
        %v1249 = vpack.c.b16 %v1129, %v1127
        %v1250 = vpack.c.b16 %v1132, %v1130
        %v1251 = vpack.c.b16 %v1133, %v1131
        %v1252 = vpack.c.b16 %v1136, %v1134
        %v1253 = vpack.c.b16 %v1137, %v1135
        %v1254 = vpack.c.b16 %v1140, %v1138
        %v1255 = vpack.c.b16 %v1141, %v1139
        %v1256 = vpack.c.b16 %v1144, %v1142
        %v1257 = vpack.c.b16 %v1145, %v1143
        %v1258 = vpack.c.b16 %v1148, %v1146
        %v1259 = vpack.c.b16 %v1149, %v1147
        %v1260 = vpack.c.b16 %v1152, %v1150
        %v1261 = vpack.c.b16 %v1153, %v1151
        %v1262 = vpack.c.b16 %v1156, %v1154
        %v1263 = vpack.c.b16 %v1157, %v1155
        %v1264 = vpack.c.b16 %v1160, %v1158
        %v1265 = vpack.c.b16 %v1161, %v1159
        %v1266 = vpack.c.b16 %v1164, %v1162
        %v1267 = vpack.c.b16 %v1165, %v1163
        %v1268 = vpack.c.b16 %v1168, %v1166
        %v1269 = vpack.c.b16 %v1169, %v1167
        %v1270 = vpack.c.b16 %v1172, %v1170
        %v1271 = vpack.c.b16 %v1173, %v1171
        %v1272 = vpack.c.b16 %v1176, %v1174
        %v1273 = vpack.c.b16 %v1177, %v1175
        %v1274 = vpack.c.b16 %v1180, %v1178
        %v1275 = vpack.c.b16 %v1181, %v1179
        %v1276 = vpack.c.b16 %v1184, %v1182
        %v1277 = vpack.c.b16 %v1185, %v1183
        %v1278 = vpack.c.b16 %v1188, %v1186
        %v1279 = vpack.c.b16 %v1189, %v1187
        %v1280 = vpack.c.b16 %v1192, %v1190
        %v1281 = vpack.c.b16 %v1193, %v1191
        %v1282 = vpack.c.b16 %v1196, %v1194
        %v1283 = vpack.c.b16 %v1197, %v1195
        %v1284 = vpack.c.b16 %v1200, %v1198
        %v1285 = vpack.c.b16 %v1201, %v1199
        %v1286 = vpack.c.b16 %v1204, %v1202
        %v1287 = vpack.c.b16 %v1205, %v1203
        %v1288 = vpack.c.b16 %v1208, %v1206
        %v1289 = vpack.c.b16 %v1209, %v1207
        %v1290 = vpack.c.b16 %v1212, %v1210
        %v1291 = vpack.c.b16 %v1213, %v1211
        %v1292 = vpack.c.b16 %v1216, %v1214
        %v1293 = vpack.c.b16 %v1217, %v1215
        %v1294 = vpack.c.b16 %v1220, %v1218
        %v1295 = vpack.c.b16 %v1221, %v1219
        %v1296 = vpack.c.b16 %v1224, %v1222
        %v1297 = vpack.c.b16 %v1225, %v1223
        %v1298 = vpack.c.b16 %v1228, %v1226
        %v1299 = vpack.c.b16 %v1229, %v1227
        %v1300 = vpack.c.b16 %v1232, %v1230
        %v1301 = vpack.c.b16 %v1233, %v1231
        %v1302 = vpack.c.b16 %v1236, %v1234
        %v1303 = vpack.c.b16 %v1237, %v1235
        %v1304 = vpack.c.b16 %v1240, %v1238
        %v1305 = vpack.c.b16 %v1241, %v1239
        %1370 = vmatprep.subr.bf16.mxu0 %v1257
        %1371 = vmatpush1.bf16.msra.mxu0 %v1256
        %1372 = vmatprep.subr.bf16.mxu0 %v1255
        %1373 = vmatpush1.bf16.msra.mxu0 %v1254
        %1374 = vmatprep.subr.bf16.mxu0 %v1253
        %1375 = vmatpush1.bf16.msra.mxu0 %v1252
        %1376 = vmatprep.subr.bf16.mxu0 %v1251
        %1377 = vmatpush1.bf16.msra.mxu0 %v1250
        %1378 = vmatprep.subr.bf16.mxu0 %v1249
        %1379 = vmatpush1.bf16.msra.mxu0 %v1248
        %1380 = vmatprep.subr.bf16.mxu0 %v1247
        %1381 = vmatpush1.bf16.msra.mxu0 %v1246
        %1382 = vmatprep.subr.bf16.mxu0 %v1245
        %1383 = vmatpush1.bf16.msra.mxu0 %v1244
        %1384 = vmatprep.subr.bf16.mxu0 %v1243
        %1385 = vmatpush1.bf16.msra.mxu0 %v1242
        %1386 = vmatprep.subr.bf16.mxu0 %v1273
        %1387 = vmatpush2.bf16.msra.mxu0 %v1272
        %1388 = vmatprep.subr.bf16.mxu0 %v1271
        %1389 = vmatpush2.bf16.msra.mxu0 %v1270
        %1390 = vmatprep.subr.bf16.mxu0 %v1269
        %1391 = vmatpush2.bf16.msra.mxu0 %v1268
        %1392 = vmatprep.subr.bf16.mxu0 %v1267
        %1393 = vmatpush2.bf16.msra.mxu0 %v1266
        %1394 = vmatprep.subr.bf16.mxu0 %v1265
        %1395 = vmatpush2.bf16.msra.mxu0 %v1264
        %1396 = vmatprep.subr.bf16.mxu0 %v1263
        %1397 = vmatpush2.bf16.msra.mxu0 %v1262
        %1398 = vmatprep.subr.bf16.mxu0 %v1261
        %1399 = vmatpush2.bf16.msra.mxu0 %v1260
        %1400 = vmatprep.subr.bf16.mxu0 %v1259
        %1401 = vmatpush2.bf16.msra.mxu0 %v1258
        %1402 = vmatprep.mubr.bf16.mxu0 %v967
        %1403 = vmatmul.mubr.bf16.gmra.mxu0 %v966
        %v1404 = vpop.f32.mrf.mxu0
        %v1405 = vadd.f32 %v1043, %v1404
        %v1406 = vpop.f32.mrf.mxu0
        %v1407 = vadd.f32 %v1047, %v1406
        %v1408 = vpop.f32.mrf.mxu0
        %v1409 = vadd.f32 %v1043, %v1408
        %v1410 = vpop.f32.mrf.mxu0
        %v1411 = vadd.f32 %v1047, %v1410
        %1412 = vmatprep.mubr.bf16.mxu0 %v971
        %1413 = vmatmul.mubr.bf16.gmra.mxu0 %v970
        %v1414 = vpop.f32.mrf.mxu0
        %v1415 = vadd.f32 %v1043, %v1414
        %v1416 = vpop.f32.mrf.mxu0
        %v1417 = vadd.f32 %v1047, %v1416
        %v1418 = vpop.f32.mrf.mxu0
        %v1419 = vadd.f32 %v1043, %v1418
        %v1420 = vpop.f32.mrf.mxu0
        %v1421 = vadd.f32 %v1047, %v1420
        %1422 = vdwg.mxu0
        %1423 = vmatprep.subr.bf16.mxu0 %v1289
        %1424 = vmatpush1.bf16.msra.mxu0 %v1288
        %1425 = vmatprep.subr.bf16.mxu0 %v1287
        %1426 = vmatpush1.bf16.msra.mxu0 %v1286
        %1427 = vmatprep.subr.bf16.mxu0 %v1285
        %1428 = vmatpush1.bf16.msra.mxu0 %v1284
        %1429 = vmatprep.subr.bf16.mxu0 %v1283
        %1430 = vmatpush1.bf16.msra.mxu0 %v1282
        %1431 = vmatprep.subr.bf16.mxu0 %v1281
        %1432 = vmatpush1.bf16.msra.mxu0 %v1280
        %1433 = vmatprep.subr.bf16.mxu0 %v1279
        %1434 = vmatpush1.bf16.msra.mxu0 %v1278
        %1435 = vmatprep.subr.bf16.mxu0 %v1277
        %1436 = vmatpush1.bf16.msra.mxu0 %v1276
        %1437 = vmatprep.subr.bf16.mxu0 %v1275
        %1438 = vmatpush1.bf16.msra.mxu0 %v1274
        %1439 = vmatprep.subr.bf16.mxu0 %v1305
        %1440 = vmatpush2.bf16.msra.mxu0 %v1304
        %1441 = vmatprep.subr.bf16.mxu0 %v1303
        %1442 = vmatpush2.bf16.msra.mxu0 %v1302
        %1443 = vmatprep.subr.bf16.mxu0 %v1301
        %1444 = vmatpush2.bf16.msra.mxu0 %v1300
        %1445 = vmatprep.subr.bf16.mxu0 %v1299
        %1446 = vmatpush2.bf16.msra.mxu0 %v1298
        %1447 = vmatprep.subr.bf16.mxu0 %v1297
        %1448 = vmatpush2.bf16.msra.mxu0 %v1296
        %1449 = vmatprep.subr.bf16.mxu0 %v1295
        %1450 = vmatpush2.bf16.msra.mxu0 %v1294
        %1451 = vmatprep.subr.bf16.mxu0 %v1293
        %1452 = vmatpush2.bf16.msra.mxu0 %v1292
        %1453 = vmatprep.subr.bf16.mxu0 %v1291
        %1454 = vmatpush2.bf16.msra.mxu0 %v1290
        %1455 = vmatprep.mubr.bf16.mxu0 %v969
        %1456 = vmatmul.mubr.bf16.gmra.mxu0 %v968
        %v1457 = vpop.f32.mrf.mxu0
        %v1458 = vadd.f32 %v1405, %v1457
        %v1459 = vpop.f32.mrf.mxu0
        %v1460 = vadd.f32 %v1407, %v1459
        %v1461 = vpop.f32.mrf.mxu0
        %v1462 = vadd.f32 %v1409, %v1461
        %v1463 = vpop.f32.mrf.mxu0
        %v1464 = vadd.f32 %v1411, %v1463
        %1465 = vmatprep.mubr.bf16.mxu0 %v973
        %1466 = vmatmul.mubr.bf16.gmra.mxu0 %v972
        %v1467 = vpop.f32.mrf.mxu0
        %v1468 = vadd.f32 %v1415, %v1467
        %v1469 = vpop.f32.mrf.mxu0
        %v1470 = vadd.f32 %v1417, %v1469
        %v1471 = vpop.f32.mrf.mxu0
        %v1472 = vadd.f32 %v1419, %v1471
        %v1473 = vpop.f32.mrf.mxu0
        %v1474 = vadd.f32 %v1421, %v1473
        %1475 = vdwg.mxu0
        %v1476 = vmax.f32 %v1458, 0.0
        %v1477 = vmax.f32 %v1460, 0.0
        %v1478 = vmax.f32 %v1462, 0.0
        %v1479 = vmax.f32 %v1464, 0.0
        %v1480 = vmax.f32 %v1468, 0.0
        %v1481 = vmax.f32 %v1470, 0.0
        %v1482 = vmax.f32 %v1472, 0.0
        %v1483 = vmax.f32 %v1474, 0.0
        %v1484 = vpack.c.bf16 %v1478, %v1476
        %v1485 = vpack.c.bf16 %v1479, %v1477
        %v1486 = vpack.c.bf16 %v1482, %v1480
        %v1487 = vpack.c.bf16 %v1483, %v1481
        %v1488 = vld [vmem:[#allocation10] sm:$0xf]
        %v1489 = vld [vmem:[#allocation10 + $0x4] sm:$0xf]
        %v1490 = vld [vmem:[#allocation10 + $0x8] sm:$0xf]
        %v1491 = vld [vmem:[#allocation10 + $0xc] sm:$0xf]
        %v1492 = vld [vmem:[#allocation10 + $0x10] sm:$0xf]
        %v1493 = vld [vmem:[#allocation10 + $0x14] sm:$0xf]
        %v1494 = vld [vmem:[#allocation10 + $0x18] sm:$0xf]
        %v1495 = vld [vmem:[#allocation10 + $0x1c] sm:$0xf]
        %v1496 = vld [vmem:[#allocation10 + $0x20] sm:$0xf]
        %v1497 = vld [vmem:[#allocation10 + $0x24] sm:$0xf]
        %v1498 = vld [vmem:[#allocation10 + $0x28] sm:$0xf]
        %v1499 = vld [vmem:[#allocation10 + $0x2c] sm:$0xf]
        %v1500 = vld [vmem:[#allocation10 + $0x30] sm:$0xf]
        %v1501 = vld [vmem:[#allocation10 + $0x34] sm:$0xf]
        %v1502 = vld [vmem:[#allocation10 + $0x38] sm:$0xf]
        %v1503 = vld [vmem:[#allocation10 + $0x3c] sm:$0xf]
        %v1504 = vld [vmem:[#allocation10 + $0x40] sm:$0xf]
        %v1505 = vld [vmem:[#allocation10 + $0x44] sm:$0xf]
        %v1506 = vld [vmem:[#allocation10 + $0x48] sm:$0xf]
        %v1507 = vld [vmem:[#allocation10 + $0x4c] sm:$0xf]
        %v1508 = vld [vmem:[#allocation10 + $0x50] sm:$0xf]
        %v1509 = vld [vmem:[#allocation10 + $0x54] sm:$0xf]
        %v1510 = vld [vmem:[#allocation10 + $0x58] sm:$0xf]
        %v1511 = vld [vmem:[#allocation10 + $0x5c] sm:$0xf]
        %v1512 = vld [vmem:[#allocation10 + $0x60] sm:$0xf]
        %v1513 = vld [vmem:[#allocation10 + $0x64] sm:$0xf]
        %v1514 = vld [vmem:[#allocation10 + $0x68] sm:$0xf]
        %v1515 = vld [vmem:[#allocation10 + $0x6c] sm:$0xf]
        %v1516 = vld [vmem:[#allocation10 + $0x70] sm:$0xf]
        %v1517 = vld [vmem:[#allocation10 + $0x74] sm:$0xf]
        %v1518 = vld [vmem:[#allocation10 + $0x78] sm:$0xf]
        %v1519 = vld [vmem:[#allocation10 + $0x7c] sm:$0xf]
        %v1520 = vld [vmem:[%s6] sm:$0x1]
        %v1522 = vlaneseq
        %v1523 = vshrl.u32 %v1522, 7
        %v1524 = vsub.s32 0, %v1523
        %v1525 = vrot.slane %v1520, %v1524
        %v1559 = vunpack.c.l.b16 %v1488
        %v1560 = vunpack.c.l.b16 %v1489
        %v1561 = vunpack.c.l.b16 %v1490
        %v1562 = vunpack.c.l.b16 %v1491
        %v1563 = vunpack.c.l.b16 %v1492
        %v1564 = vunpack.c.l.b16 %v1493
        %v1565 = vunpack.c.l.b16 %v1494
        %v1566 = vunpack.c.l.b16 %v1495
        %v1567 = vunpack.c.l.b16 %v1496
        %v1568 = vunpack.c.l.b16 %v1497
        %v1569 = vunpack.c.l.b16 %v1498
        %v1570 = vunpack.c.l.b16 %v1499
        %v1571 = vunpack.c.l.b16 %v1500
        %v1572 = vunpack.c.l.b16 %v1501
        %v1573 = vunpack.c.l.b16 %v1502
        %v1574 = vunpack.c.l.b16 %v1503
        %v1575 = vunpack.c.l.b16 %v1504
        %v1576 = vunpack.c.l.b16 %v1505
        %v1577 = vunpack.c.l.b16 %v1506
        %v1578 = vunpack.c.l.b16 %v1507
        %v1579 = vunpack.c.l.b16 %v1508
        %v1580 = vunpack.c.l.b16 %v1509
        %v1581 = vunpack.c.l.b16 %v1510
        %v1582 = vunpack.c.l.b16 %v1511
        %v1583 = vunpack.c.l.b16 %v1512
        %v1584 = vunpack.c.l.b16 %v1513
        %v1585 = vunpack.c.l.b16 %v1514
        %v1586 = vunpack.c.l.b16 %v1515
        %v1587 = vunpack.c.l.b16 %v1516
        %v1588 = vunpack.c.l.b16 %v1517
        %v1589 = vunpack.c.l.b16 %v1518
        %v1590 = vunpack.c.l.b16 %v1519
        %v1591 = vpack.c.b16 %v1560, %v1559
        %v1592 = vpack.c.b16 %v1562, %v1561
        %v1593 = vpack.c.b16 %v1564, %v1563
        %v1594 = vpack.c.b16 %v1566, %v1565
        %v1595 = vpack.c.b16 %v1568, %v1567
        %v1596 = vpack.c.b16 %v1570, %v1569
        %v1597 = vpack.c.b16 %v1572, %v1571
        %v1598 = vpack.c.b16 %v1574, %v1573
        %v1599 = vpack.c.b16 %v1576, %v1575
        %v1600 = vpack.c.b16 %v1578, %v1577
        %v1601 = vpack.c.b16 %v1580, %v1579
        %v1602 = vpack.c.b16 %v1582, %v1581
        %v1603 = vpack.c.b16 %v1584, %v1583
        %v1604 = vpack.c.b16 %v1586, %v1585
        %v1605 = vpack.c.b16 %v1588, %v1587
        %v1606 = vpack.c.b16 %v1590, %v1589
        %1623 = vmatprep.subr.bf16.mxu0 0
        %1624 = vmatpush1.bf16.msra.mxu0 %v1598
        %1625 = vmatprep.subr.bf16.mxu0 0
        %1626 = vmatpush1.bf16.msra.mxu0 %v1597
        %1627 = vmatprep.subr.bf16.mxu0 0
        %1628 = vmatpush1.bf16.msra.mxu0 %v1596
        %1629 = vmatprep.subr.bf16.mxu0 0
        %1630 = vmatpush1.bf16.msra.mxu0 %v1595
        %1631 = vmatprep.subr.bf16.mxu0 0
        %1632 = vmatpush1.bf16.msra.mxu0 %v1594
        %1633 = vmatprep.subr.bf16.mxu0 0
        %1634 = vmatpush1.bf16.msra.mxu0 %v1593
        %1635 = vmatprep.subr.bf16.mxu0 0
        %1636 = vmatpush1.bf16.msra.mxu0 %v1592
        %1637 = vmatprep.subr.bf16.mxu0 0
        %1638 = vmatpush1.bf16.msra.mxu0 %v1591
        %1639 = vmatprep.subr.bf16.mxu0 0
        %1640 = vmatpush2.bf16.msra.mxu0 %v1606
        %1641 = vmatprep.subr.bf16.mxu0 0
        %1642 = vmatpush2.bf16.msra.mxu0 %v1605
        %1643 = vmatprep.subr.bf16.mxu0 0
        %1644 = vmatpush2.bf16.msra.mxu0 %v1604
        %1645 = vmatprep.subr.bf16.mxu0 0
        %1646 = vmatpush2.bf16.msra.mxu0 %v1603
        %1647 = vmatprep.subr.bf16.mxu0 0
        %1648 = vmatpush2.bf16.msra.mxu0 %v1602
        %1649 = vmatprep.subr.bf16.mxu0 0
        %1650 = vmatpush2.bf16.msra.mxu0 %v1601
        %1651 = vmatprep.subr.bf16.mxu0 0
        %1652 = vmatpush2.bf16.msra.mxu0 %v1600
        %1653 = vmatprep.subr.bf16.mxu0 0
        %1654 = vmatpush2.bf16.msra.mxu0 %v1599
        %1655 = vmatprep.mubr.bf16.mxu0 %v1485
        %1656 = vmatmul.mubr.bf16.gmra.mxu0 %v1484
        %v1657 = vpop.f32.mrf.mxu0
        %v1658 = vadd.f32 %v1525, %v1657
        %v1659 = vpop.f32.mrf.mxu0
        %v1660 = vpop.f32.mrf.mxu0
        %v1661 = vadd.f32 %v1525, %v1660
        %v1662 = vpop.f32.mrf.mxu0
        %1663 = vmatprep.mubr.bf16.mxu0 %v1487
        %1664 = vmatmul.mubr.bf16.gmra.mxu0 %v1486
        %v1665 = vpop.f32.mrf.mxu0
        %v1666 = vadd.f32 %v1525, %v1665
        %v1667 = vpop.f32.mrf.mxu0
        %v1668 = vpop.f32.mrf.mxu0
        %v1669 = vadd.f32 %v1525, %v1668
        %v1670 = vpop.f32.mrf.mxu0
        %1671 = vdwg.mxu0
        %v1672 = vmax.f32 %v1658, 0.0
        %v1673 = vmax.f32 %v1661, 0.0
        %v1674 = vmax.f32 %v1666, 0.0
        %v1675 = vmax.f32 %v1669, 0.0
        %v1676 = vpack.c.bf16 %v1673, %v1672
        %v1677 = vpack.c.bf16 %v1675, %v1674
        %v1678 = vld [vmem:[#allocation11] sm:$0xf]
        %v1679 = vld [vmem:[#allocation11 + $0x4] sm:$0xf]
        %v1680 = vld [vmem:[#allocation11 + $0x8] sm:$0xf]
        %v1681 = vld [vmem:[#allocation11 + $0xc] sm:$0xf]
        %v1682 = vld [vmem:[#allocation11 + $0x10] sm:$0xf]
        %v1683 = vld [vmem:[#allocation11 + $0x14] sm:$0xf]
        %v1684 = vld [vmem:[#allocation11 + $0x18] sm:$0xf]
        %v1685 = vld [vmem:[#allocation11 + $0x1c] sm:$0xf]
        %v1686 = vld [vmem:[#allocation11 + $0x20] sm:$0xf]
        %v1687 = vld [vmem:[#allocation11 + $0x24] sm:$0xf]
        %v1688 = vld [vmem:[#allocation11 + $0x28] sm:$0xf]
        %v1689 = vld [vmem:[#allocation11 + $0x2c] sm:$0xf]
        %v1690 = vld [vmem:[#allocation11 + $0x30] sm:$0xf]
        %v1691 = vld [vmem:[#allocation11 + $0x34] sm:$0xf]
        %v1692 = vld [vmem:[#allocation11 + $0x38] sm:$0xf]
        %v1693 = vld [vmem:[#allocation11 + $0x3c] sm:$0xf]
        %v1694 = vld [vmem:[%s8] sm:$0x1]
        %v1696 = vlaneseq
        %v1697 = vshrl.u32 %v1696, 7
        %v1698 = vsub.s32 0, %v1697
        %v1699 = vrot.slane %v1694, %v1698
        %v1717 = vunpack.c.l.b16 %v1678
        %v1718 = vunpack.c.l.b16 %v1679
        %v1719 = vunpack.c.l.b16 %v1680
        %v1720 = vunpack.c.l.b16 %v1681
        %v1721 = vunpack.c.l.b16 %v1682
        %v1722 = vunpack.c.l.b16 %v1683
        %v1723 = vunpack.c.l.b16 %v1684
        %v1724 = vunpack.c.l.b16 %v1685
        %v1725 = vunpack.c.l.b16 %v1686
        %v1726 = vunpack.c.l.b16 %v1687
        %v1727 = vunpack.c.l.b16 %v1688
        %v1728 = vunpack.c.l.b16 %v1689
        %v1729 = vunpack.c.l.b16 %v1690
        %v1730 = vunpack.c.l.b16 %v1691
        %v1731 = vunpack.c.l.b16 %v1692
        %v1732 = vunpack.c.l.b16 %v1693
        %v1733 = vpack.c.b16 %v1718, %v1717
        %v1734 = vpack.c.b16 %v1720, %v1719
        %v1735 = vpack.c.b16 %v1722, %v1721
        %v1736 = vpack.c.b16 %v1724, %v1723
        %v1737 = vpack.c.b16 %v1726, %v1725
        %v1738 = vpack.c.b16 %v1728, %v1727
        %v1739 = vpack.c.b16 %v1730, %v1729
        %v1740 = vpack.c.b16 %v1732, %v1731
        %1749 = vmatprep.subr.bf16.mxu0 0
        %1750 = vmatpush1.bf16.msra.mxu0 %v1740
        %1751 = vmatprep.subr.bf16.mxu0 0
        %1752 = vmatpush1.bf16.msra.mxu0 %v1739
        %1753 = vmatprep.subr.bf16.mxu0 0
        %1754 = vmatpush1.bf16.msra.mxu0 %v1738
        %1755 = vmatprep.subr.bf16.mxu0 0
        %1756 = vmatpush1.bf16.msra.mxu0 %v1737
        %1757 = vmatprep.subr.bf16.mxu0 0
        %1758 = vmatpush1.bf16.msra.mxu0 %v1736
        %1759 = vmatprep.subr.bf16.mxu0 0
        %1760 = vmatpush1.bf16.msra.mxu0 %v1735
        %1761 = vmatprep.subr.bf16.mxu0 0
        %1762 = vmatpush1.bf16.msra.mxu0 %v1734
        %1763 = vmatprep.subr.bf16.mxu0 0
        %1764 = vmatpush1.bf16.msra.mxu0 %v1733
        %1765 = vmatprep.subr.bf16.mxu0 0
        %1766 = vmatpush2.bf16.msra.mxu0 0
        %1767 = vmatprep.subr.bf16.mxu0 0
        %1768 = vmatpush2.bf16.msra.mxu0 0
        %1769 = vmatprep.subr.bf16.mxu0 0
        %1770 = vmatpush2.bf16.msra.mxu0 0
        %1771 = vmatprep.subr.bf16.mxu0 0
        %1772 = vmatpush2.bf16.msra.mxu0 0
        %1773 = vmatprep.subr.bf16.mxu0 0
        %1774 = vmatpush2.bf16.msra.mxu0 0
        %1775 = vmatprep.subr.bf16.mxu0 0
        %1776 = vmatpush2.bf16.msra.mxu0 0
        %1777 = vmatprep.subr.bf16.mxu0 0
        %1778 = vmatpush2.bf16.msra.mxu0 0
        %1779 = vmatprep.subr.bf16.mxu0 0
        %1780 = vmatpush2.bf16.msra.mxu0 0
        %1781 = vmatprep.mubr.bf16.mxu0 0
        %1782 = vmatmul.mubr.bf16.gmra.mxu0 %v1676
        %v1783 = vpop.f32.mrf.mxu0
        %v1784 = vadd.f32 %v1699, %v1783
        %v1785 = vpop.f32.mrf.mxu0
        %v1786 = vpop.f32.mrf.mxu0
        %v1787 = vadd.f32 %v1699, %v1786
        %v1788 = vpop.f32.mrf.mxu0
        %1789 = vmatprep.mubr.bf16.mxu0 0
        %1790 = vmatmul.mubr.bf16.gmra.mxu0 %v1677
        %v1791 = vpop.f32.mrf.mxu0
        %v1792 = vadd.f32 %v1699, %v1791
        %v1793 = vpop.f32.mrf.mxu0
        %v1794 = vpop.f32.mrf.mxu0
        %v1795 = vadd.f32 %v1699, %v1794
        %v1796 = vpop.f32.mrf.mxu0
        %1797 = vdwg.mxu0
        %1798 = vmax.xlane.f32.xlu0 %v1784
        %v1799 = vpop.xlane.xlu0 %1798
        %1800 = vmax.xlane.f32.xlu0 %v1787
        %v1801 = vpop.xlane.xlu0 %1800
        %1802 = vmax.xlane.f32.xlu0 %v1792
        %v1803 = vpop.xlane.xlu0 %1802
        %1804 = vmax.xlane.f32.xlu0 %v1795
        %v1805 = vpop.xlane.xlu0 %1804
        %v1806 = vsub.f32 %v1784, %v1799
        %v1807 = vsub.f32 %v1787, %v1801
        %v1808 = vsub.f32 %v1792, %v1803
        %v1809 = vsub.f32 %v1795, %v1805
        %v1810 = vmul.f32 %v1806, 1.442695
        %v1811 = vpow.pop %v1810
        %v1812 = vmul.f32 %v1807, 1.442695
        %v1813 = vpow.pop %v1812
        %v1814 = vmul.f32 %v1808, 1.442695
        %v1815 = vpow.pop %v1814
        %v1816 = vmul.f32 %v1809, 1.442695
        %v1817 = vpow.pop %v1816
        %1818 = vadd.xlane.f32.xlu0 %v1811
        %v1819 = vpop.xlane.xlu0 %1818
        %1820 = vadd.xlane.f32.xlu0 %v1813
        %v1821 = vpop.xlane.xlu0 %1820
        %1822 = vadd.xlane.f32.xlu0 %v1815
        %v1823 = vpop.xlane.xlu0 %1822
        %1824 = vadd.xlane.f32.xlu0 %v1817
        %v1825 = vpop.xlane.xlu0 %1824
        %v1826 = vlog2.pop %v1819
        %v1827 = vmul.f32 %v1826, 0.6931472
        %v1828 = vlog2.pop %v1821
        %v1829 = vmul.f32 %v1828, 0.6931472
        %v1830 = vlog2.pop %v1823
        %v1831 = vmul.f32 %v1830, 0.6931472
        %v1832 = vlog2.pop %v1825
        %v1833 = vmul.f32 %v1832, 0.6931472
        %v1834 = vsub.f32 %v1806, %v1827
        %v1835 = vsub.f32 %v1807, %v1829
        %v1836 = vsub.f32 %v1808, %v1831
        %v1837 = vsub.f32 %v1809, %v1833
        %1838 = vst [vmem:[%s422] sm:$0xff] %v1834
        %1839 = vst [vmem:[%s422 + $0x8] sm:$0xff] %v1835
        %1840 = vst [vmem:[%s422 + $0x10] sm:$0xff] %v1836
        %1841 = vst [vmem:[%s422 + $0x18] sm:$0xff] %v1837
        %s1842 = sand.u32 %s231, 1
        %s1843 = scalar_lea.sflag [#allocation4], %s1842
        %s1844 = sand.u32 %s231, 1
        %s1845 = smul.addr %s1844, 32
        %s1846 = scalar_lea.vmem [#allocation13], %s1845
        // Predicated region
        $region81: #{tpu_custom_call.1} parent=55 // pred_check
          %p1847 = pneg %p241
        $region82: #{tpu_custom_call.1} parent=55 // pred_check_branch
          %1849 = sbr.rel (%p1847) target = $region84
        $region83: #{tpu_custom_call.1} parent=55 // pred_region
          %s1850 = smul.u32 4, %s29
          %s1852 = ssub.s32 512, 512
          %1853 = vsyncadd %s1843, %s1852
          %s1854 = smul.addr %s1850, 128
          %s1855 = scalar_lea.hbm %s9, %s1854
          %s1856 = sshll.u32 %s1846, 4
          %s1857 = int_to_ptr.vmem [resolvable:$true] %s1856
          %1862 = dma.vmem_to_hbm [thread:$0]  %s1857, 512, %s1855, %s1843, 128, 128, 8
        $region84: #{tpu_custom_call.1} parent=55 // pred_fallthru
          _
      $region56: #{tpu_custom_call.1} parent=5 // pred_fallthru
        _
      %p1863 = scmp.le.s32.totalorder 2, %s24
      // Predicated region
      $region85: #{tpu_custom_call.1} parent=5 // pred_check
        %p1864 = pneg %p1863
      $region86: #{tpu_custom_call.1} parent=5 // pred_check_branch
        %1866 = sbr.rel (%p1864) target = $region88
      $region87: #{tpu_custom_call.1} parent=5 // pred_region
        %s1867 = ssub.s32 %s24, 2
        // Predicated region
        $region89: #{tpu_custom_call.1} parent=87 // pred_check
          %p1868 = pneg %p247
        $region90: #{tpu_custom_call.1} parent=87 // pred_check_branch
          %1870 = sbr.rel (%p1868) target = $region92
        $region91: #{tpu_custom_call.1} parent=87 // pred_region
          %s1871 = sand.u32 %s232, 1
          %s1872 = scalar_lea.sflag [#allocation4], %s1871
          %s1873 = sand.u32 %s232, 1
          %s1874 = smul.addr %s1873, 32
          %s1875 = scalar_lea.vmem [#allocation13], %s1874
          %1876 = dma.done %s1872, 512
        $region92: #{tpu_custom_call.1} parent=87 // pred_fallthru
          _
      $region88: #{tpu_custom_call.1} parent=5 // pred_fallthru
        _
    $region6: #{tpu_custom_call.1} parent=1 // loop_footer
      %s28 = sadd.s32 1, %s24
    $region7: #{tpu_custom_call.1} parent=1 // loop_footer_branch
      %23 = sbr.rel target = $region3
    $region8: #{tpu_custom_call.1} parent=1 // loop_exit
      _
    %1877 = vsyncpa [#allocation3], 1
    %s1878 = scalar_lea.sflag [#allocation3], 1
    %1879 = vsyncpa %s1878, 1
    %1880 = vsyncpa [#allocation6], 1
    %1881 = vsyncpa [#allocation9], 1
    %1882 = vsyncpa [#allocation12], 1
    %1883 = vsyncpa [#allocation4], 1
    %s1884 = scalar_lea.sflag [#allocation4], 1
    %1885 = vsyncpa %s1884, 1

</llo_original>
